<compile_context>
chip_gen: v6e
topology: v6e:2x2x1
jax: 0.10.0
libtpu: 0.0.40
codegen_flags: <defaults>
</compile_context>

<pallas_src>
import jax
import jax.numpy as jnp
from jax.experimental import pallas as pl
from jax.experimental.pallas import tpu as pltpu

BN_EPS = 1e-5

# Logical layer dims of MLPnet.
DIMS = [1024, 512, 256, 128, 64, 10]
# In-kernel (lane-dense, padded) dims: the 64-wide hidden layer and 10-wide
# output are zero-padded to 128.
KDIMS = [1024, 512, 256, 128, 128, 128]
H4_PAD = 128   # padded width of the 4th hidden layer (64 -> 128)
N_PAD = 128    # padded width of the output (10 -> 128)


def mlp_kernel(x_ref,
               w1_ref, t1_ref,
               w2_ref, t2_ref,
               w3_ref, t3_ref,
               w4_ref, t4_ref,
               w5_ref, b5_ref,
               o_ref):
    """Fused MLP forward for one (bm, 1024) batch tile.

    Hidden layers: ReLU( bf16(x) @ bf16(W_folded) + shift )   [fp32 accumulate]
    Final layer:   bf16(h) @ bf16(W5_pad) + b5_pad            [fp32 accumulate]
    """
    h = x_ref[...]  # bf16 (bm, 1024)

    h = jnp.dot(h, w1_ref[...], preferred_element_type=jnp.float32)
    h = jnp.maximum(h + t1_ref[...], 0.0)

    h = jnp.dot(h.astype(jnp.bfloat16), w2_ref[...],
                preferred_element_type=jnp.float32)
    h = jnp.maximum(h + t2_ref[...], 0.0)

    h = jnp.dot(h.astype(jnp.bfloat16), w3_ref[...],
                preferred_element_type=jnp.float32)
    h = jnp.maximum(h + t3_ref[...], 0.0)

    h = jnp.dot(h.astype(jnp.bfloat16), w4_ref[...],
                preferred_element_type=jnp.float32)
    h = jnp.maximum(h + t4_ref[...], 0.0)

    # Dropout(0.5): identity in eval mode.

    h = jnp.dot(h.astype(jnp.bfloat16), w5_ref[...],
                preferred_element_type=jnp.float32) + b5_ref[...]
    o_ref[...] = h.astype(o_ref.dtype)


def _round_up(n, m):
    return ((n + m - 1) // m) * m


def _choose_bm(B, bm_max):
    """Pick the batch tile: big for throughput, >=2 grid steps for v7x megacore."""
    bm = _round_up(min(bm_max, _round_up(B, 16)), 16)
    # v7x has 2 TensorCores per chip: keep at least 2 grid steps so the
    # "parallel" batch axis shards across both cores. Harmless on v5e/v6e.
    while bm > 16 and -(-B // bm) < 2:
        bm = _round_up(max(16, bm // 2), 16)
    return bm


def mlpnet_forward(x, params, *, bm=512):
    """Run the fused MLP on x of shape (B, 1024). Returns (B, 10) float32."""
    B, Din = x.shape
    assert Din == DIMS[0]

    bm = _choose_bm(B, bm)
    B_pad = _round_up(B, bm)

    x = x.astype(jnp.bfloat16)
    if B_pad != B:
        x = jnp.pad(x, ((0, B_pad - B), (0, 0)))

    (w1, t1, w2, t2, w3, t3, w4, t4, w5, b5) = params

    def const_spec(shape):
        # Full-array block, same block index every grid step -> stays resident.
        # (Could drop to single-buffering via pipeline_mode; VMEM is not tight.)
        return pl.BlockSpec(shape, lambda i: tuple(0 for _ in shape))

    in_specs = [pl.BlockSpec((bm, KDIMS[0]), lambda i: (i, 0))]  # x tile
    for w, t in ((w1, t1), (w2, t2), (w3, t3), (w4, t4)):
        in_specs += [const_spec(w.shape), const_spec(t.shape)]
    in_specs += [const_spec(w5.shape), const_spec(b5.shape)]
    out_spec = pl.BlockSpec((bm, N_PAD), lambda i: (i, 0))

    weight_elems = sum(a * b for a, b in zip(KDIMS[:-1], KDIMS[1:]))
    shift_elems = sum(KDIMS[1:])

    # Advisory cost estimate for XLA's scheduler.
    cost = pl.CostEstimate(
        flops=int(2 * B_pad * weight_elems),
        transcendentals=0,
        bytes_accessed=int(B_pad * KDIMS[0] * 2      # bf16 input
                           + weight_elems * 2        # bf16 weights
                           + shift_elems * 4         # fp32 shifts / bias
                           + B_pad * N_PAD * 2))     # bf16 output

    # Explicit scoped-VMEM budget so larger tiles never hit the default limit
    # (16 MiB v5e / 32 MiB v6e-v7x): double-buffered x/out + resident weights
    # + fp32 intermediates + headroom, capped below v7x's 64 MiB physical VMEM.
    tile_bytes = bm * KDIMS[0] * 2 + bm * N_PAD * 2
    inter_bytes = bm * shift_elems * 4
    vmem_limit = min(2 * (weight_elems * 2 + shift_elems * 4 + tile_bytes)
                     + inter_bytes + (8 << 20), 60 << 20)

    fn = pl.pallas_call(
        mlp_kernel,
        out_shape=jax.ShapeDtypeStruct((B_pad, N_PAD), jnp.bfloat16),
        grid_spec=pltpu.PrefetchScalarGridSpec(
            num_scalar_prefetch=0,
            grid=(B_pad // bm,),
            in_specs=in_specs,
            out_specs=out_spec,
        ),
        compiler_params=pltpu.CompilerParams(
            dimension_semantics=("parallel",),
            vmem_limit_bytes=int(vmem_limit),
        ),
        cost_estimate=cost,
    )
    out = fn(x, w1, t1, w2, t2, w3, t3, w4, t4, w5, b5)
    return out[:B, :DIMS[-1]].astype(jnp.float32)


def init_params(key):
    """Deterministic synthetic parameters with MLPnet.__init__ shapes.

    BN (eval-mode, running stats) is folded:
      bn(x@W + b) = (x @ (W * inv_std)) + ((b - mean) * inv_std + beta)
    Weights are stored in bf16; shifts/bias in fp32.  Layer-4 output columns
    (64->128), layer-5 input rows (64->128) and output columns (10->128) are
    zero-padded; the zero padding is exact, so results are unchanged.
    """
    keys = jax.random.split(key, 20)
    ki = iter(range(20))

    params = []
    # 4 hidden (Linear + BN) blocks.
    for li in range(4):
        din, dout = DIMS[li], DIMS[li + 1]
        w = jax.random.normal(keys[next(ki)], (din, dout), jnp.float32) * 0.05
        b = jax.random.normal(keys[next(ki)], (dout,), jnp.float32) * 0.05
        gamma = 1.0 + 0.1 * jax.random.normal(keys[next(ki)], (dout,), jnp.float32)
        beta = 0.1 * jax.random.normal(keys[next(ki)], (dout,), jnp.float32)
        running_mean = jnp.zeros((dout,), jnp.float32)
        running_var = jnp.ones((dout,), jnp.float32)

        inv_std = gamma / jnp.sqrt(running_var + BN_EPS)
        w_folded = w * inv_std.reshape(1, dout)
        shift = ((b - running_mean) * inv_std + beta).reshape(1, dout)

        dout_pad = KDIMS[li + 1]
        if dout_pad != dout:  # pad the 64-wide layer to 128 lanes
            w_folded = jnp.zeros((din, dout_pad), jnp.float32).at[:, :dout].set(w_folded)
            shift = jnp.zeros((1, dout_pad), jnp.float32).at[:, :dout].set(shift)
        params += [w_folded.astype(jnp.bfloat16), shift]

    # Final Linear(64, 10), zero-padded to (128, 128) for lane-dense MXU use.
    din, dout = DIMS[4], DIMS[5]
    w5 = jax.random.normal(keys[next(ki)], (din, dout), jnp.float32) * 0.05
    b5 = jax.random.normal(keys[next(ki)], (dout,), jnp.float32) * 0.05
    w5_pad = jnp.zeros((H4_PAD, N_PAD), jnp.float32).at[:din, :dout].set(w5)
    b5_pad = jnp.zeros((1, N_PAD), jnp.float32).at[0, :dout].set(b5)
    params += [w5_pad.astype(jnp.bfloat16), b5_pad]
    return tuple(params)


def reference_forward(x, params):
    """Pure-JAX reference mimicking the kernel's bf16-in / fp32-accumulate math."""
    (w1, t1, w2, t2, w3, t3, w4, t4, w5, b5) = params

    def q(a):  # bf16 quantization of matmul inputs / outputs
        return a.astype(jnp.bfloat16).astype(jnp.float32)

    h = q(x)
    for w, t in ((w1, t1), (w2, t2), (w3, t3), (w4, t4)):
        h = jnp.maximum(h @ w.astype(jnp.float32) + t, 0.0)
        h = q(h)
    out = h @ w5.astype(jnp.float32) + b5
    out = q(out)  # kernel stores bf16 output
    return out[:, :DIMS[-1]]


if __name__ == "__main__":
    key = jax.random.PRNGKey(0)
    kx, kp = jax.random.split(key)
    params = init_params(kp)

    for B in (32, 5):  # 32 -> bm=16, 2 grid steps; 5 -> padded-batch path
        x = jax.random.normal(jax.random.fold_in(kx, B), (B, DIMS[0]), jnp.float32)
        out = jax.block_until_ready(mlpnet_forward(x, params))
        ref = reference_forward(x, params)
        assert out.shape == (B, DIMS[-1])
        assert jnp.allclose(out, ref, atol=2e-2, rtol=2e-2), (
            B, float(jnp.max(jnp.abs(out - ref))))

    print("KERNEL_OK")
</pallas_src>

<mosaic_0001>
module attributes {stable_mosaic.version = 11 : i64} {
  func.func @mlp_kernel(%arg0: i32, %arg1: memref<16x1024xbf16, #tpu.memory_space<vmem>>, %arg2: memref<1024x512xbf16, #tpu.memory_space<vmem>>, %arg3: memref<1x512xf32, #tpu.memory_space<vmem>>, %arg4: memref<512x256xbf16, #tpu.memory_space<vmem>>, %arg5: memref<1x256xf32, #tpu.memory_space<vmem>>, %arg6: memref<256x128xbf16, #tpu.memory_space<vmem>>, %arg7: memref<1x128xf32, #tpu.memory_space<vmem>>, %arg8: memref<128x128xbf16, #tpu.memory_space<vmem>>, %arg9: memref<1x128xf32, #tpu.memory_space<vmem>>, %arg10: memref<128x128xbf16, #tpu.memory_space<vmem>>, %arg11: memref<1x128xf32, #tpu.memory_space<vmem>>, %arg12: memref<16x128xbf16, #tpu.memory_space<vmem>>) attributes {dimension_semantics = [#tpu.dimension_semantics<parallel>], iteration_bounds = array<i64: 2>, scalar_prefetch = 0 : i64, scratch_operands = 0 : i64, tpu.core_type = #tpu.core_type<tc>, window_params = [{transform_indices = @transform_0, window_bounds = array<i64: 16, 1024>}, {pipeline_mode = #tpu.pipeline_mode<synchronous>, transform_indices = @transform_1, window_bounds = array<i64: 1024, 512>}, {pipeline_mode = #tpu.pipeline_mode<synchronous>, transform_indices = @transform_2, window_bounds = array<i64: 1, 512>}, {pipeline_mode = #tpu.pipeline_mode<synchronous>, transform_indices = @transform_3, window_bounds = array<i64: 512, 256>}, {pipeline_mode = #tpu.pipeline_mode<synchronous>, transform_indices = @transform_4, window_bounds = array<i64: 1, 256>}, {pipeline_mode = #tpu.pipeline_mode<synchronous>, transform_indices = @transform_5, window_bounds = array<i64: 256, 128>}, {pipeline_mode = #tpu.pipeline_mode<synchronous>, transform_indices = @transform_6, window_bounds = array<i64: 1, 128>}, {pipeline_mode = #tpu.pipeline_mode<synchronous>, transform_indices = @transform_7, window_bounds = array<i64: 128, 128>}, {pipeline_mode = #tpu.pipeline_mode<synchronous>, transform_indices = @transform_8, window_bounds = array<i64: 1, 128>}, {pipeline_mode = #tpu.pipeline_mode<synchronous>, transform_indices = @transform_9, window_bounds = array<i64: 128, 128>}, {pipeline_mode = #tpu.pipeline_mode<synchronous>, transform_indices = @transform_10, window_bounds = array<i64: 1, 128>}, {transform_indices = @transform_11, window_bounds = array<i64: 16, 128>}]} {
    %c0 = arith.constant 0 : index
    %c0_0 = arith.constant 0 : index
    %0 = vector.load %arg1[%c0, %c0_0] : memref<16x1024xbf16, #tpu.memory_space<vmem>>, vector<16x1024xbf16>
    %c0_1 = arith.constant 0 : index
    %c0_2 = arith.constant 0 : index
    %1 = vector.load %arg2[%c0_1, %c0_2] : memref<1024x512xbf16, #tpu.memory_space<vmem>>, vector<1024x512xbf16>
    %cst = arith.constant dense<0.000000e+00> : vector<16x512xf32>
    %2 = tpu.matmul %0, %1, %cst {dimension_numbers = #tpu.dot_dimension_numbers<[1], [0], [0], [1], [0, 0, 1, 1], [], []>} : vector<16x1024xbf16>, vector<1024x512xbf16>, vector<16x512xf32> -> vector<16x512xf32>
    %c0_3 = arith.constant 0 : index
    %c0_4 = arith.constant 0 : index
    %3 = vector.load %arg3[%c0_3, %c0_4] : memref<1x512xf32, #tpu.memory_space<vmem>>, vector<1x512xf32>
    %4 = vector.broadcast %3 : vector<1x512xf32> to vector<16x512xf32>
    %5 = arith.addf %2, %4 : vector<16x512xf32>
    %cst_5 = arith.constant 0.000000e+00 : f32
    %6 = vector.broadcast %cst_5 : f32 to vector<16x512xf32>
    %7 = arith.maximumf %5, %6 : vector<16x512xf32>
    %8 = arith.truncf %7 : vector<16x512xf32> to vector<16x512xbf16>
    %c0_6 = arith.constant 0 : index
    %c0_7 = arith.constant 0 : index
    %9 = vector.load %arg4[%c0_6, %c0_7] : memref<512x256xbf16, #tpu.memory_space<vmem>>, vector<512x256xbf16>
    %cst_8 = arith.constant dense<0.000000e+00> : vector<16x256xf32>
    %10 = tpu.matmul %8, %9, %cst_8 {dimension_numbers = #tpu.dot_dimension_numbers<[1], [0], [0], [1], [0, 0, 1, 1], [], []>} : vector<16x512xbf16>, vector<512x256xbf16>, vector<16x256xf32> -> vector<16x256xf32>
    %c0_9 = arith.constant 0 : index
    %c0_10 = arith.constant 0 : index
    %11 = vector.load %arg5[%c0_9, %c0_10] : memref<1x256xf32, #tpu.memory_space<vmem>>, vector<1x256xf32>
    %12 = vector.broadcast %11 : vector<1x256xf32> to vector<16x256xf32>
    %13 = arith.addf %10, %12 : vector<16x256xf32>
    %cst_11 = arith.constant 0.000000e+00 : f32
    %14 = vector.broadcast %cst_11 : f32 to vector<16x256xf32>
    %15 = arith.maximumf %13, %14 : vector<16x256xf32>
    %16 = arith.truncf %15 : vector<16x256xf32> to vector<16x256xbf16>
    %c0_12 = arith.constant 0 : index
    %c0_13 = arith.constant 0 : index
    %17 = vector.load %arg6[%c0_12, %c0_13] : memref<256x128xbf16, #tpu.memory_space<vmem>>, vector<256x128xbf16>
    %cst_14 = arith.constant dense<0.000000e+00> : vector<16x128xf32>
    %18 = tpu.matmul %16, %17, %cst_14 {dimension_numbers = #tpu.dot_dimension_numbers<[1], [0], [0], [1], [0, 0, 1, 1], [], []>} : vector<16x256xbf16>, vector<256x128xbf16>, vector<16x128xf32> -> vector<16x128xf32>
    %c0_15 = arith.constant 0 : index
    %c0_16 = arith.constant 0 : index
    %19 = vector.load %arg7[%c0_15, %c0_16] : memref<1x128xf32, #tpu.memory_space<vmem>>, vector<1x128xf32>
    %20 = vector.broadcast %19 : vector<1x128xf32> to vector<16x128xf32>
    %21 = arith.addf %18, %20 : vector<16x128xf32>
    %cst_17 = arith.constant 0.000000e+00 : f32
    %22 = vector.broadcast %cst_17 : f32 to vector<16x128xf32>
    %23 = arith.maximumf %21, %22 : vector<16x128xf32>
    %24 = arith.truncf %23 : vector<16x128xf32> to vector<16x128xbf16>
    %c0_18 = arith.constant 0 : index
    %c0_19 = arith.constant 0 : index
    %25 = vector.load %arg8[%c0_18, %c0_19] : memref<128x128xbf16, #tpu.memory_space<vmem>>, vector<128x128xbf16>
    %cst_20 = arith.constant dense<0.000000e+00> : vector<16x128xf32>
    %26 = tpu.matmul %24, %25, %cst_20 {dimension_numbers = #tpu.dot_dimension_numbers<[1], [0], [0], [1], [0, 0, 1, 1], [], []>} : vector<16x128xbf16>, vector<128x128xbf16>, vector<16x128xf32> -> vector<16x128xf32>
    %c0_21 = arith.constant 0 : index
    %c0_22 = arith.constant 0 : index
    %27 = vector.load %arg9[%c0_21, %c0_22] : memref<1x128xf32, #tpu.memory_space<vmem>>, vector<1x128xf32>
    %28 = vector.broadcast %27 : vector<1x128xf32> to vector<16x128xf32>
    %29 = arith.addf %26, %28 : vector<16x128xf32>
    %cst_23 = arith.constant 0.000000e+00 : f32
    %30 = vector.broadcast %cst_23 : f32 to vector<16x128xf32>
    %31 = arith.maximumf %29, %30 : vector<16x128xf32>
    %32 = arith.truncf %31 : vector<16x128xf32> to vector<16x128xbf16>
    %c0_24 = arith.constant 0 : index
    %c0_25 = arith.constant 0 : index
    %33 = vector.load %arg10[%c0_24, %c0_25] : memref<128x128xbf16, #tpu.memory_space<vmem>>, vector<128x128xbf16>
    %cst_26 = arith.constant dense<0.000000e+00> : vector<16x128xf32>
    %34 = tpu.matmul %32, %33, %cst_26 {dimension_numbers = #tpu.dot_dimension_numbers<[1], [0], [0], [1], [0, 0, 1, 1], [], []>} : vector<16x128xbf16>, vector<128x128xbf16>, vector<16x128xf32> -> vector<16x128xf32>
    %c0_27 = arith.constant 0 : index
    %c0_28 = arith.constant 0 : index
    %35 = vector.load %arg11[%c0_27, %c0_28] : memref<1x128xf32, #tpu.memory_space<vmem>>, vector<1x128xf32>
    %36 = vector.broadcast %35 : vector<1x128xf32> to vector<16x128xf32>
    %37 = arith.addf %34, %36 : vector<16x128xf32>
    %38 = arith.truncf %37 : vector<16x128xf32> to vector<16x128xbf16>
    %c0_29 = arith.constant 0 : index
    %c0_30 = arith.constant 0 : index
    %39 = vector.load %arg12[%c0_29, %c0_30] : memref<16x128xbf16, #tpu.memory_space<vmem>>, vector<16x128xbf16>
    tpu.vector_store %arg12[%c0_29, %c0_30], %38 {strides = array<i32>} : memref<16x128xbf16, #tpu.memory_space<vmem>>, vector<16x128xbf16>,
    return
  }
  func.func @transform_0(%arg0: i32) -> (i32, i32) {
    %c0_i32 = arith.constant 0 : i32
    %c0_i32_0 = arith.constant 0 : i32
    return %arg0, %c0_i32 : i32, i32
  }
  func.func @transform_1(%arg0: i32) -> (i32, i32) {
    %c0_i32 = arith.constant 0 : i32
    %c0_i32_0 = arith.constant 0 : i32
    %c0_i32_1 = arith.constant 0 : i32
    return %c0_i32, %c0_i32_0 : i32, i32
  }
  func.func @transform_2(%arg0: i32) -> (i32, i32) {
    %c0_i32 = arith.constant 0 : i32
    %c0_i32_0 = arith.constant 0 : i32
    %c0_i32_1 = arith.constant 0 : i32
    return %c0_i32, %c0_i32_0 : i32, i32
  }
  func.func @transform_3(%arg0: i32) -> (i32, i32) {
    %c0_i32 = arith.constant 0 : i32
    %c0_i32_0 = arith.constant 0 : i32
    %c0_i32_1 = arith.constant 0 : i32
    return %c0_i32, %c0_i32_0 : i32, i32
  }
  func.func @transform_4(%arg0: i32) -> (i32, i32) {
    %c0_i32 = arith.constant 0 : i32
    %c0_i32_0 = arith.constant 0 : i32
    %c0_i32_1 = arith.constant 0 : i32
    return %c0_i32, %c0_i32_0 : i32, i32
  }
  func.func @transform_5(%arg0: i32) -> (i32, i32) {
    %c0_i32 = arith.constant 0 : i32
    %c0_i32_0 = arith.constant 0 : i32
    %c0_i32_1 = arith.constant 0 : i32
    return %c0_i32, %c0_i32_0 : i32, i32
  }
  func.func @transform_6(%arg0: i32) -> (i32, i32) {
    %c0_i32 = arith.constant 0 : i32
    %c0_i32_0 = arith.constant 0 : i32
    %c0_i32_1 = arith.constant 0 : i32
    return %c0_i32, %c0_i32_0 : i32, i32
  }
  func.func @transform_7(%arg0: i32) -> (i32, i32) {
    %c0_i32 = arith.constant 0 : i32
    %c0_i32_0 = arith.constant 0 : i32
    %c0_i32_1 = arith.constant 0 : i32
    return %c0_i32, %c0_i32_0 : i32, i32
  }
  func.func @transform_8(%arg0: i32) -> (i32, i32) {
    %c0_i32 = arith.constant 0 : i32
    %c0_i32_0 = arith.constant 0 : i32
    %c0_i32_1 = arith.constant 0 : i32
    return %c0_i32, %c0_i32_0 : i32, i32
  }
  func.func @transform_9(%arg0: i32) -> (i32, i32) {
    %c0_i32 = arith.constant 0 : i32
    %c0_i32_0 = arith.constant 0 : i32
    %c0_i32_1 = arith.constant 0 : i32
    return %c0_i32, %c0_i32_0 : i32, i32
  }
  func.func @transform_10(%arg0: i32) -> (i32, i32) {
    %c0_i32 = arith.constant 0 : i32
    %c0_i32_0 = arith.constant 0 : i32
    %c0_i32_1 = arith.constant 0 : i32
    return %c0_i32, %c0_i32_0 : i32, i32
  }
  func.func @transform_11(%arg0: i32) -> (i32, i32) {
    %c0_i32 = arith.constant 0 : i32
    %c0_i32_0 = arith.constant 0 : i32
    return %arg0, %c0_i32 : i32, i32
  }
}

</mosaic_0001>

<llo_original>
// kernel: tpu_custom_call.1
$region0: #{tpu_custom_call.1}
  #allocation0 [shape = 'u32[]', space=smem, size = 0x4, offset = 0x4, fixed_abs, tag = 'smem constant byte address 0x4 - core index']
  #allocation1 [shape = 'u32[144,128]{1,0:T(1,128)}', space=vmem, size = 0x12000, scoped, tag = 'internal scratch']
  %s0 = inlined_call_operand.hbm [shape: bf16[32,1024], index: 0, kind: input, shape index: {}]
  %s1 = inlined_call_operand.hbm [shape: bf16[1024,512], index: 1, kind: input, shape index: {}]
  %s2 = inlined_call_operand.hbm [shape: f32[1,512], index: 2, kind: input, shape index: {}]
  %s3 = inlined_call_operand.hbm [shape: bf16[512,256], index: 3, kind: input, shape index: {}]
  %s4 = inlined_call_operand.vmem [shape: f32[1,256], index: 4, kind: input, shape index: {}]
  %s5 = inlined_call_operand.hbm [shape: bf16[256,128], index: 5, kind: input, shape index: {}]
  %s6 = inlined_call_operand.vmem [shape: f32[1,128], index: 6, kind: input, shape index: {}]
  %s7 = inlined_call_operand.hbm [shape: bf16[128,128], index: 7, kind: input, shape index: {}]
  %s8 = inlined_call_operand.vmem [shape: f32[1,128], index: 8, kind: input, shape index: {}]
  %s9 = inlined_call_operand.hbm [shape: bf16[128,128], index: 9, kind: input, shape index: {}]
  %s10 = inlined_call_operand.vmem [shape: f32[1,128], index: 10, kind: input, shape index: {}]
  %s11 = inlined_call_operand.hbm [shape: bf16[32,128], index: 11, kind: output, shape index: {}]
  %s12 = sld [smem:[#allocation0]]
  $region105: #{tpu_custom_call.1} parent=0
    _
  %s14 = ssub.s32 1, %s12
  %s15 = scalar_select 0, %s14, %s12
  $region1: #{tpu_custom_call.1} parent=0
    #allocation2 [shape = 'u8[65536]{0}', space=vmem, size = 0x10000, scoped, tag = 'input window, operand 0']
    #allocation3 [shape = 's32[2]{0}', space=sflag, size = 0x8, scoped, tag = 'scoped memory for tpu_custom_call.1']
    #allocation4 [shape = 's32[2]{0}', space=sflag, size = 0x8, scoped, tag = 'scoped memory for tpu_custom_call.1']
    #allocation5 [shape = 'u8[1048576]{0}', space=vmem, size = 0x100000, scoped, tag = 'input window, operand 1, single buffered']
    #allocation6 [shape = 's32[1]{0}', space=sflag, size = 0x4, scoped, tag = 'scoped memory for tpu_custom_call.1']
    #allocation7 [shape = 'u8[2048]{0}', space=vmem, size = 0x800, scoped, tag = 'input window, operand 2, single buffered']
    #allocation8 [shape = 'u8[262144]{0}', space=vmem, size = 0x40000, scoped, tag = 'input window, operand 3, single buffered']
    #allocation9 [shape = 's32[1]{0}', space=sflag, size = 0x4, scoped, tag = 'scoped memory for tpu_custom_call.1']
    #allocation10 [shape = 'u8[65536]{0}', space=vmem, size = 0x10000, scoped, tag = 'input window, operand 5, single buffered']
    #allocation11 [shape = 'u8[32768]{0}', space=vmem, size = 0x8000, scoped, tag = 'input window, operand 7, single buffered']
    #allocation12 [shape = 's32[1]{0}', space=sflag, size = 0x4, scoped, tag = 'scoped memory for tpu_custom_call.1']
    #allocation13 [shape = 'u8[32768]{0}', space=vmem, size = 0x8000, scoped, tag = 'input window, operand 9, single buffered']
    #allocation14 [shape = 'u8[8192]{0}', space=vmem, size = 0x2000, scoped, tag = 'output window, operand 0']
    %16 = vsyncpa [#allocation3], 0
    %s17 = scalar_lea.sflag [#allocation3], 1
    %18 = vsyncpa %s17, 0
    %19 = vsyncpa [#allocation6], 0
    %20 = vsyncpa [#allocation9], 0
    %21 = vsyncpa [#allocation12], 0
    %22 = vsyncpa [#allocation4], 0
    %s23 = scalar_lea.sflag [#allocation4], 1
    %24 = vsyncpa %s23, 0
    loop: start=0, step=1, limit=4
    $region2: #{tpu_custom_call.1} parent=1 // loop_pre_header
      _
    $region3: #{tpu_custom_call.1} parent=1 // loop_header
      %s26 = sphi 0, %s30
      %p27 = scmp.ge.s32.totalorder %s26, 4
      %s36 = sphi 0, %s38
      %s39 = sphi 0, %s36
      %s40 = sphi 0, %s39
      %s56 = sphi 0, %s40
      %s60 = sphi 0, %s60
      %s62 = sphi 0, %s60
      %s63 = sphi 0, %s62
      %s77 = sphi 0, %s63
      %s81 = sphi 0, %s81
      %s83 = sphi 0, %s81
      %s84 = sphi 0, %s83
      %s98 = sphi 0, %s84
      %s102 = sphi 0, %s102
      %s104 = sphi 0, %s102
      %s105 = sphi 0, %s104
      %s119 = sphi 0, %s105
      %s123 = sphi 0, %s123
      %s125 = sphi 0, %s123
      %s126 = sphi 0, %s125
      %s140 = sphi 0, %s126
      %s144 = sphi 0, %s144
      %s146 = sphi 0, %s144
      %s147 = sphi 0, %s146
      %s161 = sphi 0, %s147
      %s165 = sphi 0, %s165
      %s167 = sphi 0, %s165
      %s168 = sphi 0, %s167
      %s182 = sphi 0, %s168
      %s186 = sphi 0, %s186
      %s188 = sphi 0, %s186
      %s189 = sphi 0, %s188
      %s203 = sphi 0, %s189
      %s207 = sphi 0, %s207
      %s209 = sphi 0, %s207
      %s210 = sphi 0, %s209
      %s224 = sphi 0, %s210
      %s228 = sphi 0, %s228
      %s230 = sphi 0, %s228
      %s231 = sphi 0, %s230
      %s245 = sphi 0, %s231
      %s249 = sphi 0, %s249
      %s251 = sphi 0, %s249
      %s252 = sphi 0, %s251
      %s266 = sphi 0, %s252
      %s272 = sphi 0, %s274
      %s275 = sphi 0, %s272
      %s276 = sphi 0, %s275
      %s292 = sphi 0, %s276
    $region4: #{tpu_custom_call.1} parent=1 // loop_header_branch
      %29 = sbr.rel (%p27) target = $region8
    $region5: #{tpu_custom_call.1} parent=1 // loop_body
      %s31 = ssub.s32 %s26, 1
      %s32 = ssub.s32 %s26, 2
      %s33 = sadd.s32 %s26, 1
      %s34 = ssub.s32 %s26, %s33
      %p35 = scmp.eq.s32.totalorder %s34, 0
      %s37 = sadd.s32 %s36, 1
      %s38 = scalar_select %p35, %s36, %s37
      %p41 = pneg %p35
      %p42 = scmp.eq.s32.totalorder %s26, 1
      %p43 = por %p41, %p42
      %p44 = scmp.ne.s32.totalorder %s36, %s39
      %p45 = scmp.eq.s32.totalorder %s26, 0
      %p46 = por %p44, %p45
      %p47 = scmp.ne.s32.totalorder %s36, %s39
      %p48 = scmp.eq.s32.totalorder %s31, 1
      %p49 = por %p47, %p48
      %p50 = scmp.ne.s32.totalorder %s39, %s40
      %p51 = scmp.eq.s32.totalorder %s31, 0
      %p52 = por %p50, %p51
      %p53 = scmp.ne.s32.totalorder %s39, %s40
      %p54 = scmp.eq.s32.totalorder %s32, 1
      %p55 = por %p53, %p54
      %p57 = scmp.ne.s32.totalorder %s40, %s56
      %p58 = scmp.eq.s32.totalorder %s32, 0
      %p59 = por %p57, %p58
      %s61 = sadd.s32 %s60, 1
      %p64 = scmp.eq.s32.totalorder %s26, 1
      %p65 = scmp.ne.s32.totalorder %s60, %s62
      %p66 = scmp.eq.s32.totalorder %s26, 0
      %p67 = por %p65, %p66
      %p68 = scmp.ne.s32.totalorder %s60, %s62
      %p69 = scmp.eq.s32.totalorder %s31, 1
      %p70 = por %p68, %p69
      %p71 = scmp.ne.s32.totalorder %s62, %s63
      %p72 = scmp.eq.s32.totalorder %s31, 0
      %p73 = por %p71, %p72
      %p74 = scmp.ne.s32.totalorder %s62, %s63
      %p75 = scmp.eq.s32.totalorder %s32, 1
      %p76 = por %p74, %p75
      %p78 = scmp.ne.s32.totalorder %s63, %s77
      %p79 = scmp.eq.s32.totalorder %s32, 0
      %p80 = por %p78, %p79
      %s82 = sadd.s32 %s81, 1
      %p85 = scmp.eq.s32.totalorder %s26, 1
      %p86 = scmp.ne.s32.totalorder %s81, %s83
      %p87 = scmp.eq.s32.totalorder %s26, 0
      %p88 = por %p86, %p87
      %p89 = scmp.ne.s32.totalorder %s81, %s83
      %p90 = scmp.eq.s32.totalorder %s31, 1
      %p91 = por %p89, %p90
      %p92 = scmp.ne.s32.totalorder %s83, %s84
      %p93 = scmp.eq.s32.totalorder %s31, 0
      %p94 = por %p92, %p93
      %p95 = scmp.ne.s32.totalorder %s83, %s84
      %p96 = scmp.eq.s32.totalorder %s32, 1
      %p97 = por %p95, %p96
      %p99 = scmp.ne.s32.totalorder %s84, %s98
      %p100 = scmp.eq.s32.totalorder %s32, 0
      %p101 = por %p99, %p100
      %s103 = sadd.s32 %s102, 1
      %p106 = scmp.eq.s32.totalorder %s26, 1
      %p107 = scmp.ne.s32.totalorder %s102, %s104
      %p108 = scmp.eq.s32.totalorder %s26, 0
      %p109 = por %p107, %p108
      %p110 = scmp.ne.s32.totalorder %s102, %s104
      %p111 = scmp.eq.s32.totalorder %s31, 1
      %p112 = por %p110, %p111
      %p113 = scmp.ne.s32.totalorder %s104, %s105
      %p114 = scmp.eq.s32.totalorder %s31, 0
      %p115 = por %p113, %p114
      %p116 = scmp.ne.s32.totalorder %s104, %s105
      %p117 = scmp.eq.s32.totalorder %s32, 1
      %p118 = por %p116, %p117
      %p120 = scmp.ne.s32.totalorder %s105, %s119
      %p121 = scmp.eq.s32.totalorder %s32, 0
      %p122 = por %p120, %p121
      %s124 = sadd.s32 %s123, 1
      %p127 = scmp.eq.s32.totalorder %s26, 1
      %p128 = scmp.ne.s32.totalorder %s123, %s125
      %p129 = scmp.eq.s32.totalorder %s26, 0
      %p130 = por %p128, %p129
      %p131 = scmp.ne.s32.totalorder %s123, %s125
      %p132 = scmp.eq.s32.totalorder %s31, 1
      %p133 = por %p131, %p132
      %p134 = scmp.ne.s32.totalorder %s125, %s126
      %p135 = scmp.eq.s32.totalorder %s31, 0
      %p136 = por %p134, %p135
      %p137 = scmp.ne.s32.totalorder %s125, %s126
      %p138 = scmp.eq.s32.totalorder %s32, 1
      %p139 = por %p137, %p138
      %p141 = scmp.ne.s32.totalorder %s126, %s140
      %p142 = scmp.eq.s32.totalorder %s32, 0
      %p143 = por %p141, %p142
      %s145 = sadd.s32 %s144, 1
      %p148 = scmp.eq.s32.totalorder %s26, 1
      %p149 = scmp.ne.s32.totalorder %s144, %s146
      %p150 = scmp.eq.s32.totalorder %s26, 0
      %p151 = por %p149, %p150
      %p152 = scmp.ne.s32.totalorder %s144, %s146
      %p153 = scmp.eq.s32.totalorder %s31, 1
      %p154 = por %p152, %p153
      %p155 = scmp.ne.s32.totalorder %s146, %s147
      %p156 = scmp.eq.s32.totalorder %s31, 0
      %p157 = por %p155, %p156
      %p158 = scmp.ne.s32.totalorder %s146, %s147
      %p159 = scmp.eq.s32.totalorder %s32, 1
      %p160 = por %p158, %p159
      %p162 = scmp.ne.s32.totalorder %s147, %s161
      %p163 = scmp.eq.s32.totalorder %s32, 0
      %p164 = por %p162, %p163
      %s166 = sadd.s32 %s165, 1
      %p169 = scmp.eq.s32.totalorder %s26, 1
      %p170 = scmp.ne.s32.totalorder %s165, %s167
      %p171 = scmp.eq.s32.totalorder %s26, 0
      %p172 = por %p170, %p171
      %p173 = scmp.ne.s32.totalorder %s165, %s167
      %p174 = scmp.eq.s32.totalorder %s31, 1
      %p175 = por %p173, %p174
      %p176 = scmp.ne.s32.totalorder %s167, %s168
      %p177 = scmp.eq.s32.totalorder %s31, 0
      %p178 = por %p176, %p177
      %p179 = scmp.ne.s32.totalorder %s167, %s168
      %p180 = scmp.eq.s32.totalorder %s32, 1
      %p181 = por %p179, %p180
      %p183 = scmp.ne.s32.totalorder %s168, %s182
      %p184 = scmp.eq.s32.totalorder %s32, 0
      %p185 = por %p183, %p184
      %s187 = sadd.s32 %s186, 1
      %p190 = scmp.eq.s32.totalorder %s26, 1
      %p191 = scmp.ne.s32.totalorder %s186, %s188
      %p192 = scmp.eq.s32.totalorder %s26, 0
      %p193 = por %p191, %p192
      %p194 = scmp.ne.s32.totalorder %s186, %s188
      %p195 = scmp.eq.s32.totalorder %s31, 1
      %p196 = por %p194, %p195
      %p197 = scmp.ne.s32.totalorder %s188, %s189
      %p198 = scmp.eq.s32.totalorder %s31, 0
      %p199 = por %p197, %p198
      %p200 = scmp.ne.s32.totalorder %s188, %s189
      %p201 = scmp.eq.s32.totalorder %s32, 1
      %p202 = por %p200, %p201
      %p204 = scmp.ne.s32.totalorder %s189, %s203
      %p205 = scmp.eq.s32.totalorder %s32, 0
      %p206 = por %p204, %p205
      %s208 = sadd.s32 %s207, 1
      %p211 = scmp.eq.s32.totalorder %s26, 1
      %p212 = scmp.ne.s32.totalorder %s207, %s209
      %p213 = scmp.eq.s32.totalorder %s26, 0
      %p214 = por %p212, %p213
      %p215 = scmp.ne.s32.totalorder %s207, %s209
      %p216 = scmp.eq.s32.totalorder %s31, 1
      %p217 = por %p215, %p216
      %p218 = scmp.ne.s32.totalorder %s209, %s210
      %p219 = scmp.eq.s32.totalorder %s31, 0
      %p220 = por %p218, %p219
      %p221 = scmp.ne.s32.totalorder %s209, %s210
      %p222 = scmp.eq.s32.totalorder %s32, 1
      %p223 = por %p221, %p222
      %p225 = scmp.ne.s32.totalorder %s210, %s224
      %p226 = scmp.eq.s32.totalorder %s32, 0
      %p227 = por %p225, %p226
      %s229 = sadd.s32 %s228, 1
      %p232 = scmp.eq.s32.totalorder %s26, 1
      %p233 = scmp.ne.s32.totalorder %s228, %s230
      %p234 = scmp.eq.s32.totalorder %s26, 0
      %p235 = por %p233, %p234
      %p236 = scmp.ne.s32.totalorder %s228, %s230
      %p237 = scmp.eq.s32.totalorder %s31, 1
      %p238 = por %p236, %p237
      %p239 = scmp.ne.s32.totalorder %s230, %s231
      %p240 = scmp.eq.s32.totalorder %s31, 0
      %p241 = por %p239, %p240
      %p242 = scmp.ne.s32.totalorder %s230, %s231
      %p243 = scmp.eq.s32.totalorder %s32, 1
      %p244 = por %p242, %p243
      %p246 = scmp.ne.s32.totalorder %s231, %s245
      %p247 = scmp.eq.s32.totalorder %s32, 0
      %p248 = por %p246, %p247
      %s250 = sadd.s32 %s249, 1
      %p253 = scmp.eq.s32.totalorder %s26, 1
      %p254 = scmp.ne.s32.totalorder %s249, %s251
      %p255 = scmp.eq.s32.totalorder %s26, 0
      %p256 = por %p254, %p255
      %p257 = scmp.ne.s32.totalorder %s249, %s251
      %p258 = scmp.eq.s32.totalorder %s31, 1
      %p259 = por %p257, %p258
      %p260 = scmp.ne.s32.totalorder %s251, %s252
      %p261 = scmp.eq.s32.totalorder %s31, 0
      %p262 = por %p260, %p261
      %p263 = scmp.ne.s32.totalorder %s251, %s252
      %p264 = scmp.eq.s32.totalorder %s32, 1
      %p265 = por %p263, %p264
      %p267 = scmp.ne.s32.totalorder %s252, %s266
      %p268 = scmp.eq.s32.totalorder %s32, 0
      %p269 = por %p267, %p268
      %s270 = ssub.s32 %s26, %s33
      %p271 = scmp.eq.s32.totalorder %s270, 0
      %s273 = sadd.s32 %s272, 1
      %s274 = scalar_select %p271, %s272, %s273
      %p277 = pneg %p271
      %p278 = scmp.eq.s32.totalorder %s26, 1
      %p279 = por %p277, %p278
      %p280 = scmp.ne.s32.totalorder %s272, %s275
      %p281 = scmp.eq.s32.totalorder %s26, 0
      %p282 = por %p280, %p281
      %p283 = scmp.ne.s32.totalorder %s272, %s275
      %p284 = scmp.eq.s32.totalorder %s31, 1
      %p285 = por %p283, %p284
      %p286 = scmp.ne.s32.totalorder %s275, %s276
      %p287 = scmp.eq.s32.totalorder %s31, 0
      %p288 = por %p286, %p287
      %p289 = scmp.ne.s32.totalorder %s275, %s276
      %p290 = scmp.eq.s32.totalorder %s32, 1
      %p291 = por %p289, %p290
      %p293 = scmp.ne.s32.totalorder %s276, %s292
      %p294 = scmp.eq.s32.totalorder %s32, 0
      %p295 = por %p293, %p294
      %p296 = scmp.le.s32.totalorder 1, %s26
      %p297 = scmp.lt.s32.totalorder %s26, 3
      %p298 = pnand %p296, %p297
      %p299 = pneg %p298
      // Predicated region
      $region9: #{tpu_custom_call.1} parent=5 // pred_check
        _
      $region10: #{tpu_custom_call.1} parent=5 // pred_check_branch
        %301 = sbr.rel (%p298) target = $region12
      $region11: #{tpu_custom_call.1} parent=5 // pred_region
        %s302 = ssub.s32 %s26, 1
        // Predicated region
        $region13: #{tpu_custom_call.1} parent=11 // pred_check
          %p303 = pneg %p73
        $region14: #{tpu_custom_call.1} parent=11 // pred_check_branch
          %305 = sbr.rel (%p303) target = $region16
        $region15: #{tpu_custom_call.1} parent=11 // pred_region
          %s307 = ssub.s32 32768, 32768
          %308 = vsyncadd [#allocation6], %s307
          %s309 = sshll.u32 [#allocation5], 4
          %s310 = int_to_ptr.vmem [resolvable:$true] %s309
          %315 = dma.hbm_to_vmem [thread:$0]  %s1, 32768, %s310, [#allocation6], 256, 256, 16
        $region16: #{tpu_custom_call.1} parent=11 // pred_fallthru
          _
        // Predicated region
        $region17: #{tpu_custom_call.1} parent=11 // pred_check
          %p316 = pneg %p94
        $region18: #{tpu_custom_call.1} parent=11 // pred_check_branch
          %318 = sbr.rel (%p316) target = $region20
        $region19: #{tpu_custom_call.1} parent=11 // pred_region
          %s320 = ssub.s32 64, 64
          %321 = vsyncadd [#allocation6], %s320
          %s323 = sshll.u32 [#allocation7], 4
          %s324 = int_to_ptr.vmem [resolvable:$true] %s323
          %326 = dma.hbm_to_vmem [thread:$0]  %s2, 64, %s324, [#allocation6]
        $region20: #{tpu_custom_call.1} parent=11 // pred_fallthru
          _
        // Predicated region
        $region21: #{tpu_custom_call.1} parent=11 // pred_check
          %p327 = pneg %p115
        $region22: #{tpu_custom_call.1} parent=11 // pred_check_branch
          %329 = sbr.rel (%p327) target = $region24
        $region23: #{tpu_custom_call.1} parent=11 // pred_region
          %s331 = ssub.s32 8192, 8192
          %332 = vsyncadd [#allocation9], %s331
          %s333 = sshll.u32 [#allocation8], 4
          %s334 = int_to_ptr.vmem [resolvable:$true] %s333
          %339 = dma.hbm_to_vmem [thread:$0]  %s3, 8192, %s334, [#allocation9], 128, 128, 8
        $region24: #{tpu_custom_call.1} parent=11 // pred_fallthru
          _
        // Predicated region
        $region25: #{tpu_custom_call.1} parent=11 // pred_check
          %p340 = pneg %p136
        $region26: #{tpu_custom_call.1} parent=11 // pred_check_branch
          %342 = sbr.rel (%p340) target = $region28
        $region27: #{tpu_custom_call.1} parent=11 // pred_region
          _
        $region28: #{tpu_custom_call.1} parent=11 // pred_fallthru
          _
        // Predicated region
        $region29: #{tpu_custom_call.1} parent=11 // pred_check
          %p343 = pneg %p157
        $region30: #{tpu_custom_call.1} parent=11 // pred_check_branch
          %345 = sbr.rel (%p343) target = $region32
        $region31: #{tpu_custom_call.1} parent=11 // pred_region
          %s347 = ssub.s32 2048, 2048
          %348 = vsyncadd [#allocation9], %s347
          %s349 = sshll.u32 [#allocation10], 4
          %s350 = int_to_ptr.vmem [resolvable:$true] %s349
          %355 = dma.hbm_to_vmem [thread:$0]  %s5, 2048, %s350, [#allocation9], 64, 64, 4
        $region32: #{tpu_custom_call.1} parent=11 // pred_fallthru
          _
        // Predicated region
        $region33: #{tpu_custom_call.1} parent=11 // pred_check
          %p356 = pneg %p178
        $region34: #{tpu_custom_call.1} parent=11 // pred_check_branch
          %358 = sbr.rel (%p356) target = $region36
        $region35: #{tpu_custom_call.1} parent=11 // pred_region
          _
        $region36: #{tpu_custom_call.1} parent=11 // pred_fallthru
          _
        // Predicated region
        $region37: #{tpu_custom_call.1} parent=11 // pred_check
          %p359 = pneg %p199
        $region38: #{tpu_custom_call.1} parent=11 // pred_check_branch
          %361 = sbr.rel (%p359) target = $region40
        $region39: #{tpu_custom_call.1} parent=11 // pred_region
          %s363 = ssub.s32 1024, 1024
          %364 = vsyncadd [#allocation12], %s363
          %s365 = sshll.u32 [#allocation11], 4
          %s366 = int_to_ptr.vmem [resolvable:$true] %s365
          %371 = dma.hbm_to_vmem [thread:$0]  %s7, 1024, %s366, [#allocation12], 64, 64, 4
        $region40: #{tpu_custom_call.1} parent=11 // pred_fallthru
          _
        // Predicated region
        $region41: #{tpu_custom_call.1} parent=11 // pred_check
          %p372 = pneg %p220
        $region42: #{tpu_custom_call.1} parent=11 // pred_check_branch
          %374 = sbr.rel (%p372) target = $region44
        $region43: #{tpu_custom_call.1} parent=11 // pred_region
          _
        $region44: #{tpu_custom_call.1} parent=11 // pred_fallthru
          _
        // Predicated region
        $region45: #{tpu_custom_call.1} parent=11 // pred_check
          %p375 = pneg %p241
        $region46: #{tpu_custom_call.1} parent=11 // pred_check_branch
          %377 = sbr.rel (%p375) target = $region48
        $region47: #{tpu_custom_call.1} parent=11 // pred_region
          %s379 = ssub.s32 1024, 1024
          %380 = vsyncadd [#allocation12], %s379
          %s381 = sshll.u32 [#allocation13], 4
          %s382 = int_to_ptr.vmem [resolvable:$true] %s381
          %387 = dma.hbm_to_vmem [thread:$0]  %s9, 1024, %s382, [#allocation12], 64, 64, 4
        $region48: #{tpu_custom_call.1} parent=11 // pred_fallthru
          _
        // Predicated region
        $region49: #{tpu_custom_call.1} parent=11 // pred_check
          %p388 = pneg %p262
        $region50: #{tpu_custom_call.1} parent=11 // pred_check_branch
          %390 = sbr.rel (%p388) target = $region52
        $region51: #{tpu_custom_call.1} parent=11 // pred_region
          _
        $region52: #{tpu_custom_call.1} parent=11 // pred_fallthru
          _
      $region12: #{tpu_custom_call.1} parent=5 // pred_fallthru
        _
      %p391 = scmp.lt.s32.totalorder %s26, 2
      // Predicated region
      $region53: #{tpu_custom_call.1} parent=5 // pred_check
        %p392 = pneg %p391
      $region54: #{tpu_custom_call.1} parent=5 // pred_check_branch
        %394 = sbr.rel (%p392) target = $region56
      $region55: #{tpu_custom_call.1} parent=5 // pred_region
        // Predicated region
        $region57: #{tpu_custom_call.1} parent=55 // pred_check
          %p395 = pneg %p46
        $region58: #{tpu_custom_call.1} parent=55 // pred_check_branch
          %397 = sbr.rel (%p395) target = $region60
        $region59: #{tpu_custom_call.1} parent=55 // pred_region
          %s398 = sand.u32 %s36, 1
          %s399 = scalar_lea.sflag [#allocation3], %s398
          %s400 = sand.u32 %s36, 1
          %s401 = smul.addr %s400, 64
          %s402 = scalar_lea.vmem [#allocation2], %s401
          %s403 = smul.u32 2, %s26
          %s405 = ssub.s32 1024, 1024
          %406 = vsyncadd %s399, %s405
          %s407 = smul.addr %s403, 8
          %s408 = smul.addr %s407, 64
          %s409 = scalar_lea.hbm %s0, %s408
          %s410 = sshll.u32 %s402, 4
          %s411 = int_to_ptr.vmem [resolvable:$true] %s410
          %416 = dma.hbm_to_vmem [thread:$0]  %s409, 1024, %s411, %s399, 512, 512, 32
        $region60: #{tpu_custom_call.1} parent=55 // pred_fallthru
          _
      $region56: #{tpu_custom_call.1} parent=5 // pred_fallthru
        _
      %p417 = scmp.le.s32.totalorder 1, %s26
      %p418 = scmp.lt.s32.totalorder %s26, 3
      %p419 = pnand %p417, %p418
      %p420 = pneg %p419
      // Predicated region
      $region61: #{tpu_custom_call.1} parent=5 // pred_check
        _
      $region62: #{tpu_custom_call.1} parent=5 // pred_check_branch
        %422 = sbr.rel (%p419) target = $region64
      $region63: #{tpu_custom_call.1} parent=5 // pred_region
        %s423 = ssub.s32 %s26, 1
        %s424 = sand.u32 %s39, 1
        %s425 = scalar_lea.sflag [#allocation3], %s424
        %s426 = sand.u32 %s39, 1
        %s427 = smul.addr %s426, 64
        %s428 = scalar_lea.vmem [#allocation2], %s427
        // Predicated region
        $region65: #{tpu_custom_call.1} parent=63 // pred_check
          %p429 = pneg %p52
        $region66: #{tpu_custom_call.1} parent=63 // pred_check_branch
          %431 = sbr.rel (%p429) target = $region68
        $region67: #{tpu_custom_call.1} parent=63 // pred_region
          %432 = dma.done %s425, 1024
        $region68: #{tpu_custom_call.1} parent=63 // pred_fallthru
          _
        // Predicated region
        $region69: #{tpu_custom_call.1} parent=63 // pred_check
          %p433 = pneg %p73
        $region70: #{tpu_custom_call.1} parent=63 // pred_check_branch
          %435 = sbr.rel (%p433) target = $region72
        $region71: #{tpu_custom_call.1} parent=63 // pred_region
          %436 = dma.done [#allocation6], 32768
        $region72: #{tpu_custom_call.1} parent=63 // pred_fallthru
          _
        // Predicated region
        $region73: #{tpu_custom_call.1} parent=63 // pred_check
          %p437 = pneg %p94
        $region74: #{tpu_custom_call.1} parent=63 // pred_check_branch
          %439 = sbr.rel (%p437) target = $region76
        $region75: #{tpu_custom_call.1} parent=63 // pred_region
          %440 = dma.done [#allocation6], 64
        $region76: #{tpu_custom_call.1} parent=63 // pred_fallthru
          _
        // Predicated region
        $region77: #{tpu_custom_call.1} parent=63 // pred_check
          %p441 = pneg %p115
        $region78: #{tpu_custom_call.1} parent=63 // pred_check_branch
          %443 = sbr.rel (%p441) target = $region80
        $region79: #{tpu_custom_call.1} parent=63 // pred_region
          %444 = dma.done [#allocation9], 8192
        $region80: #{tpu_custom_call.1} parent=63 // pred_fallthru
          _
        // Predicated region
        $region81: #{tpu_custom_call.1} parent=63 // pred_check
          %p445 = pneg %p157
        $region82: #{tpu_custom_call.1} parent=63 // pred_check_branch
          %447 = sbr.rel (%p445) target = $region84
        $region83: #{tpu_custom_call.1} parent=63 // pred_region
          %448 = dma.done [#allocation9], 2048
        $region84: #{tpu_custom_call.1} parent=63 // pred_fallthru
          _
        // Predicated region
        $region85: #{tpu_custom_call.1} parent=63 // pred_check
          %p449 = pneg %p199
        $region86: #{tpu_custom_call.1} parent=63 // pred_check_branch
          %451 = sbr.rel (%p449) target = $region88
        $region87: #{tpu_custom_call.1} parent=63 // pred_region
          %452 = dma.done [#allocation12], 1024
        $region88: #{tpu_custom_call.1} parent=63 // pred_fallthru
          _
        // Predicated region
        $region89: #{tpu_custom_call.1} parent=63 // pred_check
          %p453 = pneg %p241
        $region90: #{tpu_custom_call.1} parent=63 // pred_check_branch
          %455 = sbr.rel (%p453) target = $region92
        $region91: #{tpu_custom_call.1} parent=63 // pred_region
          %456 = dma.done [#allocation12], 1024
        $region92: #{tpu_custom_call.1} parent=63 // pred_fallthru
          _
        %s457 = sand.u32 %s39, 1
        %s458 = scalar_lea.sflag [#allocation3], %s457
        %s459 = sand.u32 %s39, 1
        %s460 = smul.addr %s459, 64
        %s461 = scalar_lea.vmem [#allocation2], %s460
        %p462 = pneg %p52
        %p463 = pneg %p49
        %p464 = pneg %p73
        %p465 = pneg %p70
        %p466 = pneg %p94
        %p467 = pneg %p91
        %p468 = pneg %p115
        %p469 = pneg %p112
        %p470 = pneg %p136
        %p471 = pneg %p133
        %p472 = pneg %p157
        %p473 = pneg %p154
        %p474 = pneg %p178
        %p475 = pneg %p175
        %p476 = pneg %p199
        %p477 = pneg %p196
        %p478 = pneg %p220
        %p479 = pneg %p217
        %p480 = pneg %p241
        %p481 = pneg %p238
        %p482 = pneg %p262
        %p483 = pneg %p259
        %p484 = pneg %p288
        %p485 = pneg %p285
        %s486 = sand.u32 %s275, 1
        %s487 = scalar_lea.sflag [#allocation4], %s486
        %s488 = sand.u32 %s275, 1
        %s489 = smul.addr %s488, 8
        %s490 = scalar_lea.vmem [#allocation14], %s489
        %s491 = smul.u32 2, %s31
        %s492 = smul.u32 2, %s31
        %v494 = vld [vmem:[%s428] sm:$0xff]
        %v495 = vld [vmem:[%s428 + $0x8] sm:$0xff]
        %v496 = vld [vmem:[%s428 + $0x10] sm:$0xff]
        %v497 = vld [vmem:[%s428 + $0x18] sm:$0xff]
        %v498 = vld [vmem:[%s428 + $0x20] sm:$0xff]
        %v499 = vld [vmem:[%s428 + $0x28] sm:$0xff]
        %v500 = vld [vmem:[%s428 + $0x30] sm:$0xff]
        %v501 = vld [vmem:[%s428 + $0x38] sm:$0xff]
        %v502 = vld [vmem:[#allocation5] sm:$0xff]
        %v503 = vld [vmem:[#allocation5 + $0x8] sm:$0xff]
        %v504 = vld [vmem:[#allocation5 + $0x10] sm:$0xff]
        %v505 = vld [vmem:[#allocation5 + $0x18] sm:$0xff]
        %v506 = vld [vmem:[#allocation5 + $0x20] sm:$0xff]
        %v507 = vld [vmem:[#allocation5 + $0x28] sm:$0xff]
        %v508 = vld [vmem:[#allocation5 + $0x30] sm:$0xff]
        %v509 = vld [vmem:[#allocation5 + $0x38] sm:$0xff]
        %v510 = vld [vmem:[#allocation5 + $0x40] sm:$0xff]
        %v511 = vld [vmem:[#allocation5 + $0x48] sm:$0xff]
        %v512 = vld [vmem:[#allocation5 + $0x50] sm:$0xff]
        %v513 = vld [vmem:[#allocation5 + $0x58] sm:$0xff]
        %v514 = vld [vmem:[#allocation5 + $0x60] sm:$0xff]
        %v515 = vld [vmem:[#allocation5 + $0x68] sm:$0xff]
        %v516 = vld [vmem:[#allocation5 + $0x70] sm:$0xff]
        %v517 = vld [vmem:[#allocation5 + $0x78] sm:$0xff]
        %v518 = vld [vmem:[#allocation5 + $0x80] sm:$0xff]
        %v519 = vld [vmem:[#allocation5 + $0x88] sm:$0xff]
        %v520 = vld [vmem:[#allocation5 + $0x90] sm:$0xff]
        %v521 = vld [vmem:[#allocation5 + $0x98] sm:$0xff]
        %v522 = vld [vmem:[#allocation5 + $0xa0] sm:$0xff]
        %v523 = vld [vmem:[#allocation5 + $0xa8] sm:$0xff]
        %v524 = vld [vmem:[#allocation5 + $0xb0] sm:$0xff]
        %v525 = vld [vmem:[#allocation5 + $0xb8] sm:$0xff]
        %v526 = vld [vmem:[#allocation5 + $0xc0] sm:$0xff]
        %v527 = vld [vmem:[#allocation5 + $0xc8] sm:$0xff]
        %v528 = vld [vmem:[#allocation5 + $0xd0] sm:$0xff]
        %v529 = vld [vmem:[#allocation5 + $0xd8] sm:$0xff]
        %v530 = vld [vmem:[#allocation5 + $0xe0] sm:$0xff]
        %v531 = vld [vmem:[#allocation5 + $0xe8] sm:$0xff]
        %v532 = vld [vmem:[#allocation5 + $0xf0] sm:$0xff]
        %v533 = vld [vmem:[#allocation5 + $0xf8] sm:$0xff]
        %v534 = vld [vmem:[#allocation5 + $0x100] sm:$0xff]
        %v535 = vld [vmem:[#allocation5 + $0x108] sm:$0xff]
        %v536 = vld [vmem:[#allocation5 + $0x110] sm:$0xff]
        %v537 = vld [vmem:[#allocation5 + $0x118] sm:$0xff]
        %v538 = vld [vmem:[#allocation5 + $0x120] sm:$0xff]
        %v539 = vld [vmem:[#allocation5 + $0x128] sm:$0xff]
        %v540 = vld [vmem:[#allocation5 + $0x130] sm:$0xff]
        %v541 = vld [vmem:[#allocation5 + $0x138] sm:$0xff]
        %v542 = vld [vmem:[#allocation5 + $0x140] sm:$0xff]
        %v543 = vld [vmem:[#allocation5 + $0x148] sm:$0xff]
        %v544 = vld [vmem:[#allocation5 + $0x150] sm:$0xff]
        %v545 = vld [vmem:[#allocation5 + $0x158] sm:$0xff]
        %v546 = vld [vmem:[#allocation5 + $0x160] sm:$0xff]
        %v547 = vld [vmem:[#allocation5 + $0x168] sm:$0xff]
        %v548 = vld [vmem:[#allocation5 + $0x170] sm:$0xff]
        %v549 = vld [vmem:[#allocation5 + $0x178] sm:$0xff]
        %v550 = vld [vmem:[#allocation5 + $0x180] sm:$0xff]
        %v551 = vld [vmem:[#allocation5 + $0x188] sm:$0xff]
        %v552 = vld [vmem:[#allocation5 + $0x190] sm:$0xff]
        %v553 = vld [vmem:[#allocation5 + $0x198] sm:$0xff]
        %v554 = vld [vmem:[#allocation5 + $0x1a0] sm:$0xff]
        %v555 = vld [vmem:[#allocation5 + $0x1a8] sm:$0xff]
        %v556 = vld [vmem:[#allocation5 + $0x1b0] sm:$0xff]
        %v557 = vld [vmem:[#allocation5 + $0x1b8] sm:$0xff]
        %v558 = vld [vmem:[#allocation5 + $0x1c0] sm:$0xff]
        %v559 = vld [vmem:[#allocation5 + $0x1c8] sm:$0xff]
        %v560 = vld [vmem:[#allocation5 + $0x1d0] sm:$0xff]
        %v561 = vld [vmem:[#allocation5 + $0x1d8] sm:$0xff]
        %v562 = vld [vmem:[#allocation5 + $0x1e0] sm:$0xff]
        %v563 = vld [vmem:[#allocation5 + $0x1e8] sm:$0xff]
        %v564 = vld [vmem:[#allocation5 + $0x1f0] sm:$0xff]
        %v565 = vld [vmem:[#allocation5 + $0x1f8] sm:$0xff]
        %v566 = vld [vmem:[#allocation5 + $0x200] sm:$0xff]
        %v567 = vld [vmem:[#allocation5 + $0x208] sm:$0xff]
        %v568 = vld [vmem:[#allocation5 + $0x210] sm:$0xff]
        %v569 = vld [vmem:[#allocation5 + $0x218] sm:$0xff]
        %v570 = vld [vmem:[#allocation5 + $0x220] sm:$0xff]
        %v571 = vld [vmem:[#allocation5 + $0x228] sm:$0xff]
        %v572 = vld [vmem:[#allocation5 + $0x230] sm:$0xff]
        %v573 = vld [vmem:[#allocation5 + $0x238] sm:$0xff]
        %v574 = vld [vmem:[#allocation5 + $0x240] sm:$0xff]
        %v575 = vld [vmem:[#allocation5 + $0x248] sm:$0xff]
        %v576 = vld [vmem:[#allocation5 + $0x250] sm:$0xff]
        %v577 = vld [vmem:[#allocation5 + $0x258] sm:$0xff]
        %v578 = vld [vmem:[#allocation5 + $0x260] sm:$0xff]
        %v579 = vld [vmem:[#allocation5 + $0x268] sm:$0xff]
        %v580 = vld [vmem:[#allocation5 + $0x270] sm:$0xff]
        %v581 = vld [vmem:[#allocation5 + $0x278] sm:$0xff]
        %v582 = vld [vmem:[#allocation5 + $0x280] sm:$0xff]
        %v583 = vld [vmem:[#allocation5 + $0x288] sm:$0xff]
        %v584 = vld [vmem:[#allocation5 + $0x290] sm:$0xff]
        %v585 = vld [vmem:[#allocation5 + $0x298] sm:$0xff]
        %v586 = vld [vmem:[#allocation5 + $0x2a0] sm:$0xff]
        %v587 = vld [vmem:[#allocation5 + $0x2a8] sm:$0xff]
        %v588 = vld [vmem:[#allocation5 + $0x2b0] sm:$0xff]
        %v589 = vld [vmem:[#allocation5 + $0x2b8] sm:$0xff]
        %v590 = vld [vmem:[#allocation5 + $0x2c0] sm:$0xff]
        %v591 = vld [vmem:[#allocation5 + $0x2c8] sm:$0xff]
        %v592 = vld [vmem:[#allocation5 + $0x2d0] sm:$0xff]
        %v593 = vld [vmem:[#allocation5 + $0x2d8] sm:$0xff]
        %v594 = vld [vmem:[#allocation5 + $0x2e0] sm:$0xff]
        %v595 = vld [vmem:[#allocation5 + $0x2e8] sm:$0xff]
        %v596 = vld [vmem:[#allocation5 + $0x2f0] sm:$0xff]
        %v597 = vld [vmem:[#allocation5 + $0x2f8] sm:$0xff]
        %v598 = vld [vmem:[#allocation5 + $0x300] sm:$0xff]
        %v599 = vld [vmem:[#allocation5 + $0x308] sm:$0xff]
        %v600 = vld [vmem:[#allocation5 + $0x310] sm:$0xff]
        %v601 = vld [vmem:[#allocation5 + $0x318] sm:$0xff]
        %v602 = vld [vmem:[#allocation5 + $0x320] sm:$0xff]
        %v603 = vld [vmem:[#allocation5 + $0x328] sm:$0xff]
        %v604 = vld [vmem:[#allocation5 + $0x330] sm:$0xff]
        %v605 = vld [vmem:[#allocation5 + $0x338] sm:$0xff]
        %v606 = vld [vmem:[#allocation5 + $0x340] sm:$0xff]
        %v607 = vld [vmem:[#allocation5 + $0x348] sm:$0xff]
        %v608 = vld [vmem:[#allocation5 + $0x350] sm:$0xff]
        %v609 = vld [vmem:[#allocation5 + $0x358] sm:$0xff]
        %v610 = vld [vmem:[#allocation5 + $0x360] sm:$0xff]
        %v611 = vld [vmem:[#allocation5 + $0x368] sm:$0xff]
        %v612 = vld [vmem:[#allocation5 + $0x370] sm:$0xff]
        %v613 = vld [vmem:[#allocation5 + $0x378] sm:$0xff]
        %v614 = vld [vmem:[#allocation5 + $0x380] sm:$0xff]
        %v615 = vld [vmem:[#allocation5 + $0x388] sm:$0xff]
        %v616 = vld [vmem:[#allocation5 + $0x390] sm:$0xff]
        %v617 = vld [vmem:[#allocation5 + $0x398] sm:$0xff]
        %v618 = vld [vmem:[#allocation5 + $0x3a0] sm:$0xff]
        %v619 = vld [vmem:[#allocation5 + $0x3a8] sm:$0xff]
        %v620 = vld [vmem:[#allocation5 + $0x3b0] sm:$0xff]
        %v621 = vld [vmem:[#allocation5 + $0x3b8] sm:$0xff]
        %v622 = vld [vmem:[#allocation5 + $0x3c0] sm:$0xff]
        %v623 = vld [vmem:[#allocation5 + $0x3c8] sm:$0xff]
        %v624 = vld [vmem:[#allocation5 + $0x3d0] sm:$0xff]
        %v625 = vld [vmem:[#allocation5 + $0x3d8] sm:$0xff]
        %v626 = vld [vmem:[#allocation5 + $0x3e0] sm:$0xff]
        %v627 = vld [vmem:[#allocation5 + $0x3e8] sm:$0xff]
        %v628 = vld [vmem:[#allocation5 + $0x3f0] sm:$0xff]
        %v629 = vld [vmem:[#allocation5 + $0x3f8] sm:$0xff]
        %v630 = vld [vmem:[#allocation5 + $0x400] sm:$0xff]
        %v631 = vld [vmem:[#allocation5 + $0x408] sm:$0xff]
        %v632 = vld [vmem:[#allocation5 + $0x410] sm:$0xff]
        %v633 = vld [vmem:[#allocation5 + $0x418] sm:$0xff]
        %v634 = vld [vmem:[#allocation5 + $0x420] sm:$0xff]
        %v635 = vld [vmem:[#allocation5 + $0x428] sm:$0xff]
        %v636 = vld [vmem:[#allocation5 + $0x430] sm:$0xff]
        %v637 = vld [vmem:[#allocation5 + $0x438] sm:$0xff]
        %v638 = vld [vmem:[#allocation5 + $0x440] sm:$0xff]
        %v639 = vld [vmem:[#allocation5 + $0x448] sm:$0xff]
        %v640 = vld [vmem:[#allocation5 + $0x450] sm:$0xff]
        %v641 = vld [vmem:[#allocation5 + $0x458] sm:$0xff]
        %v642 = vld [vmem:[#allocation5 + $0x460] sm:$0xff]
        %v643 = vld [vmem:[#allocation5 + $0x468] sm:$0xff]
        %v644 = vld [vmem:[#allocation5 + $0x470] sm:$0xff]
        %v645 = vld [vmem:[#allocation5 + $0x478] sm:$0xff]
        %v646 = vld [vmem:[#allocation5 + $0x480] sm:$0xff]
        %v647 = vld [vmem:[#allocation5 + $0x488] sm:$0xff]
        %v648 = vld [vmem:[#allocation5 + $0x490] sm:$0xff]
        %v649 = vld [vmem:[#allocation5 + $0x498] sm:$0xff]
        %v650 = vld [vmem:[#allocation5 + $0x4a0] sm:$0xff]
        %v651 = vld [vmem:[#allocation5 + $0x4a8] sm:$0xff]
        %v652 = vld [vmem:[#allocation5 + $0x4b0] sm:$0xff]
        %v653 = vld [vmem:[#allocation5 + $0x4b8] sm:$0xff]
        %v654 = vld [vmem:[#allocation5 + $0x4c0] sm:$0xff]
        %v655 = vld [vmem:[#allocation5 + $0x4c8] sm:$0xff]
        %v656 = vld [vmem:[#allocation5 + $0x4d0] sm:$0xff]
        %v657 = vld [vmem:[#allocation5 + $0x4d8] sm:$0xff]
        %v658 = vld [vmem:[#allocation5 + $0x4e0] sm:$0xff]
        %v659 = vld [vmem:[#allocation5 + $0x4e8] sm:$0xff]
        %v660 = vld [vmem:[#allocation5 + $0x4f0] sm:$0xff]
        %v661 = vld [vmem:[#allocation5 + $0x4f8] sm:$0xff]
        %v662 = vld [vmem:[#allocation5 + $0x500] sm:$0xff]
        %v663 = vld [vmem:[#allocation5 + $0x508] sm:$0xff]
        %v664 = vld [vmem:[#allocation5 + $0x510] sm:$0xff]
        %v665 = vld [vmem:[#allocation5 + $0x518] sm:$0xff]
        %v666 = vld [vmem:[#allocation5 + $0x520] sm:$0xff]
        %v667 = vld [vmem:[#allocation5 + $0x528] sm:$0xff]
        %v668 = vld [vmem:[#allocation5 + $0x530] sm:$0xff]
        %v669 = vld [vmem:[#allocation5 + $0x538] sm:$0xff]
        %v670 = vld [vmem:[#allocation5 + $0x540] sm:$0xff]
        %v671 = vld [vmem:[#allocation5 + $0x548] sm:$0xff]
        %v672 = vld [vmem:[#allocation5 + $0x550] sm:$0xff]
        %v673 = vld [vmem:[#allocation5 + $0x558] sm:$0xff]
        %v674 = vld [vmem:[#allocation5 + $0x560] sm:$0xff]
        %v675 = vld [vmem:[#allocation5 + $0x568] sm:$0xff]
        %v676 = vld [vmem:[#allocation5 + $0x570] sm:$0xff]
        %v677 = vld [vmem:[#allocation5 + $0x578] sm:$0xff]
        %v678 = vld [vmem:[#allocation5 + $0x580] sm:$0xff]
        %v679 = vld [vmem:[#allocation5 + $0x588] sm:$0xff]
        %v680 = vld [vmem:[#allocation5 + $0x590] sm:$0xff]
        %v681 = vld [vmem:[#allocation5 + $0x598] sm:$0xff]
        %v682 = vld [vmem:[#allocation5 + $0x5a0] sm:$0xff]
        %v683 = vld [vmem:[#allocation5 + $0x5a8] sm:$0xff]
        %v684 = vld [vmem:[#allocation5 + $0x5b0] sm:$0xff]
        %v685 = vld [vmem:[#allocation5 + $0x5b8] sm:$0xff]
        %v686 = vld [vmem:[#allocation5 + $0x5c0] sm:$0xff]
        %v687 = vld [vmem:[#allocation5 + $0x5c8] sm:$0xff]
        %v688 = vld [vmem:[#allocation5 + $0x5d0] sm:$0xff]
        %v689 = vld [vmem:[#allocation5 + $0x5d8] sm:$0xff]
        %v690 = vld [vmem:[#allocation5 + $0x5e0] sm:$0xff]
        %v691 = vld [vmem:[#allocation5 + $0x5e8] sm:$0xff]
        %v692 = vld [vmem:[#allocation5 + $0x5f0] sm:$0xff]
        %v693 = vld [vmem:[#allocation5 + $0x5f8] sm:$0xff]
        %v694 = vld [vmem:[#allocation5 + $0x600] sm:$0xff]
        %v695 = vld [vmem:[#allocation5 + $0x608] sm:$0xff]
        %v696 = vld [vmem:[#allocation5 + $0x610] sm:$0xff]
        %v697 = vld [vmem:[#allocation5 + $0x618] sm:$0xff]
        %v698 = vld [vmem:[#allocation5 + $0x620] sm:$0xff]
        %v699 = vld [vmem:[#allocation5 + $0x628] sm:$0xff]
        %v700 = vld [vmem:[#allocation5 + $0x630] sm:$0xff]
        %v701 = vld [vmem:[#allocation5 + $0x638] sm:$0xff]
        %v702 = vld [vmem:[#allocation5 + $0x640] sm:$0xff]
        %v703 = vld [vmem:[#allocation5 + $0x648] sm:$0xff]
        %v704 = vld [vmem:[#allocation5 + $0x650] sm:$0xff]
        %v705 = vld [vmem:[#allocation5 + $0x658] sm:$0xff]
        %v706 = vld [vmem:[#allocation5 + $0x660] sm:$0xff]
        %v707 = vld [vmem:[#allocation5 + $0x668] sm:$0xff]
        %v708 = vld [vmem:[#allocation5 + $0x670] sm:$0xff]
        %v709 = vld [vmem:[#allocation5 + $0x678] sm:$0xff]
        %v710 = vld [vmem:[#allocation5 + $0x680] sm:$0xff]
        %v711 = vld [vmem:[#allocation5 + $0x688] sm:$0xff]
        %v712 = vld [vmem:[#allocation5 + $0x690] sm:$0xff]
        %v713 = vld [vmem:[#allocation5 + $0x698] sm:$0xff]
        %v714 = vld [vmem:[#allocation5 + $0x6a0] sm:$0xff]
        %v715 = vld [vmem:[#allocation5 + $0x6a8] sm:$0xff]
        %v716 = vld [vmem:[#allocation5 + $0x6b0] sm:$0xff]
        %v717 = vld [vmem:[#allocation5 + $0x6b8] sm:$0xff]
        %v718 = vld [vmem:[#allocation5 + $0x6c0] sm:$0xff]
        %v719 = vld [vmem:[#allocation5 + $0x6c8] sm:$0xff]
        %v720 = vld [vmem:[#allocation5 + $0x6d0] sm:$0xff]
        %v721 = vld [vmem:[#allocation5 + $0x6d8] sm:$0xff]
        %v722 = vld [vmem:[#allocation5 + $0x6e0] sm:$0xff]
        %v723 = vld [vmem:[#allocation5 + $0x6e8] sm:$0xff]
        %v724 = vld [vmem:[#allocation5 + $0x6f0] sm:$0xff]
        %v725 = vld [vmem:[#allocation5 + $0x6f8] sm:$0xff]
        %v726 = vld [vmem:[#allocation5 + $0x700] sm:$0xff]
        %v727 = vld [vmem:[#allocation5 + $0x708] sm:$0xff]
        %v728 = vld [vmem:[#allocation5 + $0x710] sm:$0xff]
        %v729 = vld [vmem:[#allocation5 + $0x718] sm:$0xff]
        %v730 = vld [vmem:[#allocation5 + $0x720] sm:$0xff]
        %v731 = vld [vmem:[#allocation5 + $0x728] sm:$0xff]
        %v732 = vld [vmem:[#allocation5 + $0x730] sm:$0xff]
        %v733 = vld [vmem:[#allocation5 + $0x738] sm:$0xff]
        %v734 = vld [vmem:[#allocation5 + $0x740] sm:$0xff]
        %v735 = vld [vmem:[#allocation5 + $0x748] sm:$0xff]
        %v736 = vld [vmem:[#allocation5 + $0x750] sm:$0xff]
        %v737 = vld [vmem:[#allocation5 + $0x758] sm:$0xff]
        %v738 = vld [vmem:[#allocation5 + $0x760] sm:$0xff]
        %v739 = vld [vmem:[#allocation5 + $0x768] sm:$0xff]
        %v740 = vld [vmem:[#allocation5 + $0x770] sm:$0xff]
        %v741 = vld [vmem:[#allocation5 + $0x778] sm:$0xff]
        %v742 = vld [vmem:[#allocation5 + $0x780] sm:$0xff]
        %v743 = vld [vmem:[#allocation5 + $0x788] sm:$0xff]
        %v744 = vld [vmem:[#allocation5 + $0x790] sm:$0xff]
        %v745 = vld [vmem:[#allocation5 + $0x798] sm:$0xff]
        %v746 = vld [vmem:[#allocation5 + $0x7a0] sm:$0xff]
        %v747 = vld [vmem:[#allocation5 + $0x7a8] sm:$0xff]
        %v748 = vld [vmem:[#allocation5 + $0x7b0] sm:$0xff]
        %v749 = vld [vmem:[#allocation5 + $0x7b8] sm:$0xff]
        %v750 = vld [vmem:[#allocation5 + $0x7c0] sm:$0xff]
        %v751 = vld [vmem:[#allocation5 + $0x7c8] sm:$0xff]
        %v752 = vld [vmem:[#allocation5 + $0x7d0] sm:$0xff]
        %v753 = vld [vmem:[#allocation5 + $0x7d8] sm:$0xff]
        %v754 = vld [vmem:[#allocation5 + $0x7e0] sm:$0xff]
        %v755 = vld [vmem:[#allocation5 + $0x7e8] sm:$0xff]
        %v756 = vld [vmem:[#allocation5 + $0x7f0] sm:$0xff]
        %v757 = vld [vmem:[#allocation5 + $0x7f8] sm:$0xff]
        %v758 = vld [vmem:[#allocation7] sm:$0xf]
        %v760 = vlaneseq
        %v761 = vshrl.u32 %v760, 7
        %v762 = vsub.s32 0, %v761
        %v763 = vrot.slane %v758, %v762
        %v764 = vlaneseq
        %v765 = vshrl.u32 %v764, 7
        %v766 = vsub.s32 1, %v765
        %v767 = vrot.slane %v758, %v766
        %v768 = vlaneseq
        %v769 = vshrl.u32 %v768, 7
        %v770 = vsub.s32 2, %v769
        %v771 = vrot.slane %v758, %v770
        %v772 = vlaneseq
        %v773 = vshrl.u32 %v772, 7
        %v774 = vsub.s32 3, %v773
        %v775 = vrot.slane %v758, %v774
        %v788 = vunpack.c.l.b16 %v494
        %v789 = vunpack.c.h.b16 %v494
        %v790 = vunpack.c.l.b16 %v495
        %v791 = vunpack.c.h.b16 %v495
        %v792 = vunpack.c.l.b16 %v496
        %v793 = vunpack.c.h.b16 %v496
        %v794 = vunpack.c.l.b16 %v497
        %v795 = vunpack.c.h.b16 %v497
        %v796 = vunpack.c.l.b16 %v498
        %v797 = vunpack.c.h.b16 %v498
        %v798 = vunpack.c.l.b16 %v499
        %v799 = vunpack.c.h.b16 %v499
        %v800 = vunpack.c.l.b16 %v500
        %v801 = vunpack.c.h.b16 %v500
        %v802 = vunpack.c.l.b16 %v501
        %v803 = vunpack.c.h.b16 %v501
        %v804 = vpack.c.b16 %v796, %v788
        %v805 = vpack.c.b16 %v797, %v789
        %v806 = vpack.c.b16 %v798, %v790
        %v807 = vpack.c.b16 %v799, %v791
        %v808 = vpack.c.b16 %v800, %v792
        %v809 = vpack.c.b16 %v801, %v793
        %v810 = vpack.c.b16 %v802, %v794
        %v811 = vpack.c.b16 %v803, %v795
        %v1076 = vunpack.c.l.b16 %v502
        %v1077 = vunpack.c.h.b16 %v502
        %v1078 = vunpack.c.l.b16 %v503
        %v1079 = vunpack.c.h.b16 %v503
        %v1080 = vunpack.c.l.b16 %v504
        %v1081 = vunpack.c.h.b16 %v504
        %v1082 = vunpack.c.l.b16 %v505
        %v1083 = vunpack.c.h.b16 %v505
        %v1084 = vunpack.c.l.b16 %v506
        %v1085 = vunpack.c.h.b16 %v506
        %v1086 = vunpack.c.l.b16 %v507
        %v1087 = vunpack.c.h.b16 %v507
        %v1088 = vunpack.c.l.b16 %v508
        %v1089 = vunpack.c.h.b16 %v508
        %v1090 = vunpack.c.l.b16 %v509
        %v1091 = vunpack.c.h.b16 %v509
        %v1092 = vunpack.c.l.b16 %v510
        %v1093 = vunpack.c.h.b16 %v510
        %v1094 = vunpack.c.l.b16 %v511
        %v1095 = vunpack.c.h.b16 %v511
        %v1096 = vunpack.c.l.b16 %v512
        %v1097 = vunpack.c.h.b16 %v512
        %v1098 = vunpack.c.l.b16 %v513
        %v1099 = vunpack.c.h.b16 %v513
        %v1100 = vunpack.c.l.b16 %v514
        %v1101 = vunpack.c.h.b16 %v514
        %v1102 = vunpack.c.l.b16 %v515
        %v1103 = vunpack.c.h.b16 %v515
        %v1104 = vunpack.c.l.b16 %v516
        %v1105 = vunpack.c.h.b16 %v516
        %v1106 = vunpack.c.l.b16 %v517
        %v1107 = vunpack.c.h.b16 %v517
        %v1108 = vunpack.c.l.b16 %v518
        %v1109 = vunpack.c.h.b16 %v518
        %v1110 = vunpack.c.l.b16 %v519
        %v1111 = vunpack.c.h.b16 %v519
        %v1112 = vunpack.c.l.b16 %v520
        %v1113 = vunpack.c.h.b16 %v520
        %v1114 = vunpack.c.l.b16 %v521
        %v1115 = vunpack.c.h.b16 %v521
        %v1116 = vunpack.c.l.b16 %v522
        %v1117 = vunpack.c.h.b16 %v522
        %v1118 = vunpack.c.l.b16 %v523
        %v1119 = vunpack.c.h.b16 %v523
        %v1120 = vunpack.c.l.b16 %v524
        %v1121 = vunpack.c.h.b16 %v524
        %v1122 = vunpack.c.l.b16 %v525
        %v1123 = vunpack.c.h.b16 %v525
        %v1124 = vunpack.c.l.b16 %v526
        %v1125 = vunpack.c.h.b16 %v526
        %v1126 = vunpack.c.l.b16 %v527
        %v1127 = vunpack.c.h.b16 %v527
        %v1128 = vunpack.c.l.b16 %v528
        %v1129 = vunpack.c.h.b16 %v528
        %v1130 = vunpack.c.l.b16 %v529
        %v1131 = vunpack.c.h.b16 %v529
        %v1132 = vunpack.c.l.b16 %v530
        %v1133 = vunpack.c.h.b16 %v530
        %v1134 = vunpack.c.l.b16 %v531
        %v1135 = vunpack.c.h.b16 %v531
        %v1136 = vunpack.c.l.b16 %v532
        %v1137 = vunpack.c.h.b16 %v532
        %v1138 = vunpack.c.l.b16 %v533
        %v1139 = vunpack.c.h.b16 %v533
        %v1140 = vunpack.c.l.b16 %v534
        %v1141 = vunpack.c.h.b16 %v534
        %v1142 = vunpack.c.l.b16 %v535
        %v1143 = vunpack.c.h.b16 %v535
        %v1144 = vunpack.c.l.b16 %v536
        %v1145 = vunpack.c.h.b16 %v536
        %v1146 = vunpack.c.l.b16 %v537
        %v1147 = vunpack.c.h.b16 %v537
        %v1148 = vunpack.c.l.b16 %v538
        %v1149 = vunpack.c.h.b16 %v538
        %v1150 = vunpack.c.l.b16 %v539
        %v1151 = vunpack.c.h.b16 %v539
        %v1152 = vunpack.c.l.b16 %v540
        %v1153 = vunpack.c.h.b16 %v540
        %v1154 = vunpack.c.l.b16 %v541
        %v1155 = vunpack.c.h.b16 %v541
        %v1156 = vunpack.c.l.b16 %v542
        %v1157 = vunpack.c.h.b16 %v542
        %v1158 = vunpack.c.l.b16 %v543
        %v1159 = vunpack.c.h.b16 %v543
        %v1160 = vunpack.c.l.b16 %v544
        %v1161 = vunpack.c.h.b16 %v544
        %v1162 = vunpack.c.l.b16 %v545
        %v1163 = vunpack.c.h.b16 %v545
        %v1164 = vunpack.c.l.b16 %v546
        %v1165 = vunpack.c.h.b16 %v546
        %v1166 = vunpack.c.l.b16 %v547
        %v1167 = vunpack.c.h.b16 %v547
        %v1168 = vunpack.c.l.b16 %v548
        %v1169 = vunpack.c.h.b16 %v548
        %v1170 = vunpack.c.l.b16 %v549
        %v1171 = vunpack.c.h.b16 %v549
        %v1172 = vunpack.c.l.b16 %v550
        %v1173 = vunpack.c.h.b16 %v550
        %v1174 = vunpack.c.l.b16 %v551
        %v1175 = vunpack.c.h.b16 %v551
        %v1176 = vunpack.c.l.b16 %v552
        %v1177 = vunpack.c.h.b16 %v552
        %v1178 = vunpack.c.l.b16 %v553
        %v1179 = vunpack.c.h.b16 %v553
        %v1180 = vunpack.c.l.b16 %v554
        %v1181 = vunpack.c.h.b16 %v554
        %v1182 = vunpack.c.l.b16 %v555
        %v1183 = vunpack.c.h.b16 %v555
        %v1184 = vunpack.c.l.b16 %v556
        %v1185 = vunpack.c.h.b16 %v556
        %v1186 = vunpack.c.l.b16 %v557
        %v1187 = vunpack.c.h.b16 %v557
        %v1188 = vunpack.c.l.b16 %v558
        %v1189 = vunpack.c.h.b16 %v558
        %v1190 = vunpack.c.l.b16 %v559
        %v1191 = vunpack.c.h.b16 %v559
        %v1192 = vunpack.c.l.b16 %v560
        %v1193 = vunpack.c.h.b16 %v560
        %v1194 = vunpack.c.l.b16 %v561
        %v1195 = vunpack.c.h.b16 %v561
        %v1196 = vunpack.c.l.b16 %v562
        %v1197 = vunpack.c.h.b16 %v562
        %v1198 = vunpack.c.l.b16 %v563
        %v1199 = vunpack.c.h.b16 %v563
        %v1200 = vunpack.c.l.b16 %v564
        %v1201 = vunpack.c.h.b16 %v564
        %v1202 = vunpack.c.l.b16 %v565
        %v1203 = vunpack.c.h.b16 %v565
        %v1204 = vunpack.c.l.b16 %v566
        %v1205 = vunpack.c.h.b16 %v566
        %v1206 = vunpack.c.l.b16 %v567
        %v1207 = vunpack.c.h.b16 %v567
        %v1208 = vunpack.c.l.b16 %v568
        %v1209 = vunpack.c.h.b16 %v568
        %v1210 = vunpack.c.l.b16 %v569
        %v1211 = vunpack.c.h.b16 %v569
        %v1212 = vunpack.c.l.b16 %v570
        %v1213 = vunpack.c.h.b16 %v570
        %v1214 = vunpack.c.l.b16 %v571
        %v1215 = vunpack.c.h.b16 %v571
        %v1216 = vunpack.c.l.b16 %v572
        %v1217 = vunpack.c.h.b16 %v572
        %v1218 = vunpack.c.l.b16 %v573
        %v1219 = vunpack.c.h.b16 %v573
        %v1220 = vunpack.c.l.b16 %v574
        %v1221 = vunpack.c.h.b16 %v574
        %v1222 = vunpack.c.l.b16 %v575
        %v1223 = vunpack.c.h.b16 %v575
        %v1224 = vunpack.c.l.b16 %v576
        %v1225 = vunpack.c.h.b16 %v576
        %v1226 = vunpack.c.l.b16 %v577
        %v1227 = vunpack.c.h.b16 %v577
        %v1228 = vunpack.c.l.b16 %v578
        %v1229 = vunpack.c.h.b16 %v578
        %v1230 = vunpack.c.l.b16 %v579
        %v1231 = vunpack.c.h.b16 %v579
        %v1232 = vunpack.c.l.b16 %v580
        %v1233 = vunpack.c.h.b16 %v580
        %v1234 = vunpack.c.l.b16 %v581
        %v1235 = vunpack.c.h.b16 %v581
        %v1236 = vunpack.c.l.b16 %v582
        %v1237 = vunpack.c.h.b16 %v582
        %v1238 = vunpack.c.l.b16 %v583
        %v1239 = vunpack.c.h.b16 %v583
        %v1240 = vunpack.c.l.b16 %v584
        %v1241 = vunpack.c.h.b16 %v584
        %v1242 = vunpack.c.l.b16 %v585
        %v1243 = vunpack.c.h.b16 %v585
        %v1244 = vunpack.c.l.b16 %v586
        %v1245 = vunpack.c.h.b16 %v586
        %v1246 = vunpack.c.l.b16 %v587
        %v1247 = vunpack.c.h.b16 %v587
        %v1248 = vunpack.c.l.b16 %v588
        %v1249 = vunpack.c.h.b16 %v588
        %v1250 = vunpack.c.l.b16 %v589
        %v1251 = vunpack.c.h.b16 %v589
        %v1252 = vunpack.c.l.b16 %v590
        %v1253 = vunpack.c.h.b16 %v590
        %v1254 = vunpack.c.l.b16 %v591
        %v1255 = vunpack.c.h.b16 %v591
        %v1256 = vunpack.c.l.b16 %v592
        %v1257 = vunpack.c.h.b16 %v592
        %v1258 = vunpack.c.l.b16 %v593
        %v1259 = vunpack.c.h.b16 %v593
        %v1260 = vunpack.c.l.b16 %v594
        %v1261 = vunpack.c.h.b16 %v594
        %v1262 = vunpack.c.l.b16 %v595
        %v1263 = vunpack.c.h.b16 %v595
        %v1264 = vunpack.c.l.b16 %v596
        %v1265 = vunpack.c.h.b16 %v596
        %v1266 = vunpack.c.l.b16 %v597
        %v1267 = vunpack.c.h.b16 %v597
        %v1268 = vunpack.c.l.b16 %v598
        %v1269 = vunpack.c.h.b16 %v598
        %v1270 = vunpack.c.l.b16 %v599
        %v1271 = vunpack.c.h.b16 %v599
        %v1272 = vunpack.c.l.b16 %v600
        %v1273 = vunpack.c.h.b16 %v600
        %v1274 = vunpack.c.l.b16 %v601
        %v1275 = vunpack.c.h.b16 %v601
        %v1276 = vunpack.c.l.b16 %v602
        %v1277 = vunpack.c.h.b16 %v602
        %v1278 = vunpack.c.l.b16 %v603
        %v1279 = vunpack.c.h.b16 %v603
        %v1280 = vunpack.c.l.b16 %v604
        %v1281 = vunpack.c.h.b16 %v604
        %v1282 = vunpack.c.l.b16 %v605
        %v1283 = vunpack.c.h.b16 %v605
        %v1284 = vunpack.c.l.b16 %v606
        %v1285 = vunpack.c.h.b16 %v606
        %v1286 = vunpack.c.l.b16 %v607
        %v1287 = vunpack.c.h.b16 %v607
        %v1288 = vunpack.c.l.b16 %v608
        %v1289 = vunpack.c.h.b16 %v608
        %v1290 = vunpack.c.l.b16 %v609
        %v1291 = vunpack.c.h.b16 %v609
        %v1292 = vunpack.c.l.b16 %v610
        %v1293 = vunpack.c.h.b16 %v610
        %v1294 = vunpack.c.l.b16 %v611
        %v1295 = vunpack.c.h.b16 %v611
        %v1296 = vunpack.c.l.b16 %v612
        %v1297 = vunpack.c.h.b16 %v612
        %v1298 = vunpack.c.l.b16 %v613
        %v1299 = vunpack.c.h.b16 %v613
        %v1300 = vunpack.c.l.b16 %v614
        %v1301 = vunpack.c.h.b16 %v614
        %v1302 = vunpack.c.l.b16 %v615
        %v1303 = vunpack.c.h.b16 %v615
        %v1304 = vunpack.c.l.b16 %v616
        %v1305 = vunpack.c.h.b16 %v616
        %v1306 = vunpack.c.l.b16 %v617
        %v1307 = vunpack.c.h.b16 %v617
        %v1308 = vunpack.c.l.b16 %v618
        %v1309 = vunpack.c.h.b16 %v618
        %v1310 = vunpack.c.l.b16 %v619
        %v1311 = vunpack.c.h.b16 %v619
        %v1312 = vunpack.c.l.b16 %v620
        %v1313 = vunpack.c.h.b16 %v620
        %v1314 = vunpack.c.l.b16 %v621
        %v1315 = vunpack.c.h.b16 %v621
        %v1316 = vunpack.c.l.b16 %v622
        %v1317 = vunpack.c.h.b16 %v622
        %v1318 = vunpack.c.l.b16 %v623
        %v1319 = vunpack.c.h.b16 %v623
        %v1320 = vunpack.c.l.b16 %v624
        %v1321 = vunpack.c.h.b16 %v624
        %v1322 = vunpack.c.l.b16 %v625
        %v1323 = vunpack.c.h.b16 %v625
        %v1324 = vunpack.c.l.b16 %v626
        %v1325 = vunpack.c.h.b16 %v626
        %v1326 = vunpack.c.l.b16 %v627
        %v1327 = vunpack.c.h.b16 %v627
        %v1328 = vunpack.c.l.b16 %v628
        %v1329 = vunpack.c.h.b16 %v628
        %v1330 = vunpack.c.l.b16 %v629
        %v1331 = vunpack.c.h.b16 %v629
        %v1332 = vunpack.c.l.b16 %v630
        %v1333 = vunpack.c.h.b16 %v630
        %v1334 = vunpack.c.l.b16 %v631
        %v1335 = vunpack.c.h.b16 %v631
        %v1336 = vunpack.c.l.b16 %v632
        %v1337 = vunpack.c.h.b16 %v632
        %v1338 = vunpack.c.l.b16 %v633
        %v1339 = vunpack.c.h.b16 %v633
        %v1340 = vunpack.c.l.b16 %v634
        %v1341 = vunpack.c.h.b16 %v634
        %v1342 = vunpack.c.l.b16 %v635
        %v1343 = vunpack.c.h.b16 %v635
        %v1344 = vunpack.c.l.b16 %v636
        %v1345 = vunpack.c.h.b16 %v636
        %v1346 = vunpack.c.l.b16 %v637
        %v1347 = vunpack.c.h.b16 %v637
        %v1348 = vunpack.c.l.b16 %v638
        %v1349 = vunpack.c.h.b16 %v638
        %v1350 = vunpack.c.l.b16 %v639
        %v1351 = vunpack.c.h.b16 %v639
        %v1352 = vunpack.c.l.b16 %v640
        %v1353 = vunpack.c.h.b16 %v640
        %v1354 = vunpack.c.l.b16 %v641
        %v1355 = vunpack.c.h.b16 %v641
        %v1356 = vunpack.c.l.b16 %v642
        %v1357 = vunpack.c.h.b16 %v642
        %v1358 = vunpack.c.l.b16 %v643
        %v1359 = vunpack.c.h.b16 %v643
        %v1360 = vunpack.c.l.b16 %v644
        %v1361 = vunpack.c.h.b16 %v644
        %v1362 = vunpack.c.l.b16 %v645
        %v1363 = vunpack.c.h.b16 %v645
        %v1364 = vunpack.c.l.b16 %v646
        %v1365 = vunpack.c.h.b16 %v646
        %v1366 = vunpack.c.l.b16 %v647
        %v1367 = vunpack.c.h.b16 %v647
        %v1368 = vunpack.c.l.b16 %v648
        %v1369 = vunpack.c.h.b16 %v648
        %v1370 = vunpack.c.l.b16 %v649
        %v1371 = vunpack.c.h.b16 %v649
        %v1372 = vunpack.c.l.b16 %v650
        %v1373 = vunpack.c.h.b16 %v650
        %v1374 = vunpack.c.l.b16 %v651
        %v1375 = vunpack.c.h.b16 %v651
        %v1376 = vunpack.c.l.b16 %v652
        %v1377 = vunpack.c.h.b16 %v652
        %v1378 = vunpack.c.l.b16 %v653
        %v1379 = vunpack.c.h.b16 %v653
        %v1380 = vunpack.c.l.b16 %v654
        %v1381 = vunpack.c.h.b16 %v654
        %v1382 = vunpack.c.l.b16 %v655
        %v1383 = vunpack.c.h.b16 %v655
        %v1384 = vunpack.c.l.b16 %v656
        %v1385 = vunpack.c.h.b16 %v656
        %v1386 = vunpack.c.l.b16 %v657
        %v1387 = vunpack.c.h.b16 %v657
        %v1388 = vunpack.c.l.b16 %v658
        %v1389 = vunpack.c.h.b16 %v658
        %v1390 = vunpack.c.l.b16 %v659
        %v1391 = vunpack.c.h.b16 %v659
        %v1392 = vunpack.c.l.b16 %v660
        %v1393 = vunpack.c.h.b16 %v660
        %v1394 = vunpack.c.l.b16 %v661
        %v1395 = vunpack.c.h.b16 %v661
        %v1396 = vunpack.c.l.b16 %v662
        %v1397 = vunpack.c.h.b16 %v662
        %v1398 = vunpack.c.l.b16 %v663
        %v1399 = vunpack.c.h.b16 %v663
        %v1400 = vunpack.c.l.b16 %v664
        %v1401 = vunpack.c.h.b16 %v664
        %v1402 = vunpack.c.l.b16 %v665
        %v1403 = vunpack.c.h.b16 %v665
        %v1404 = vunpack.c.l.b16 %v666
        %v1405 = vunpack.c.h.b16 %v666
        %v1406 = vunpack.c.l.b16 %v667
        %v1407 = vunpack.c.h.b16 %v667
        %v1408 = vunpack.c.l.b16 %v668
        %v1409 = vunpack.c.h.b16 %v668
        %v1410 = vunpack.c.l.b16 %v669
        %v1411 = vunpack.c.h.b16 %v669
        %v1412 = vunpack.c.l.b16 %v670
        %v1413 = vunpack.c.h.b16 %v670
        %v1414 = vunpack.c.l.b16 %v671
        %v1415 = vunpack.c.h.b16 %v671
        %v1416 = vunpack.c.l.b16 %v672
        %v1417 = vunpack.c.h.b16 %v672
        %v1418 = vunpack.c.l.b16 %v673
        %v1419 = vunpack.c.h.b16 %v673
        %v1420 = vunpack.c.l.b16 %v674
        %v1421 = vunpack.c.h.b16 %v674
        %v1422 = vunpack.c.l.b16 %v675
        %v1423 = vunpack.c.h.b16 %v675
        %v1424 = vunpack.c.l.b16 %v676
        %v1425 = vunpack.c.h.b16 %v676
        %v1426 = vunpack.c.l.b16 %v677
        %v1427 = vunpack.c.h.b16 %v677
        %v1428 = vunpack.c.l.b16 %v678
        %v1429 = vunpack.c.h.b16 %v678
        %v1430 = vunpack.c.l.b16 %v679
        %v1431 = vunpack.c.h.b16 %v679
        %v1432 = vunpack.c.l.b16 %v680
        %v1433 = vunpack.c.h.b16 %v680
        %v1434 = vunpack.c.l.b16 %v681
        %v1435 = vunpack.c.h.b16 %v681
        %v1436 = vunpack.c.l.b16 %v682
        %v1437 = vunpack.c.h.b16 %v682
        %v1438 = vunpack.c.l.b16 %v683
        %v1439 = vunpack.c.h.b16 %v683
        %v1440 = vunpack.c.l.b16 %v684
        %v1441 = vunpack.c.h.b16 %v684
        %v1442 = vunpack.c.l.b16 %v685
        %v1443 = vunpack.c.h.b16 %v685
        %v1444 = vunpack.c.l.b16 %v686
        %v1445 = vunpack.c.h.b16 %v686
        %v1446 = vunpack.c.l.b16 %v687
        %v1447 = vunpack.c.h.b16 %v687
        %v1448 = vunpack.c.l.b16 %v688
        %v1449 = vunpack.c.h.b16 %v688
        %v1450 = vunpack.c.l.b16 %v689
        %v1451 = vunpack.c.h.b16 %v689
        %v1452 = vunpack.c.l.b16 %v690
        %v1453 = vunpack.c.h.b16 %v690
        %v1454 = vunpack.c.l.b16 %v691
        %v1455 = vunpack.c.h.b16 %v691
        %v1456 = vunpack.c.l.b16 %v692
        %v1457 = vunpack.c.h.b16 %v692
        %v1458 = vunpack.c.l.b16 %v693
        %v1459 = vunpack.c.h.b16 %v693
        %v1460 = vunpack.c.l.b16 %v694
        %v1461 = vunpack.c.h.b16 %v694
        %v1462 = vunpack.c.l.b16 %v695
        %v1463 = vunpack.c.h.b16 %v695
        %v1464 = vunpack.c.l.b16 %v696
        %v1465 = vunpack.c.h.b16 %v696
        %v1466 = vunpack.c.l.b16 %v697
        %v1467 = vunpack.c.h.b16 %v697
        %v1468 = vunpack.c.l.b16 %v698
        %v1469 = vunpack.c.h.b16 %v698
        %v1470 = vunpack.c.l.b16 %v699
        %v1471 = vunpack.c.h.b16 %v699
        %v1472 = vunpack.c.l.b16 %v700
        %v1473 = vunpack.c.h.b16 %v700
        %v1474 = vunpack.c.l.b16 %v701
        %v1475 = vunpack.c.h.b16 %v701
        %v1476 = vunpack.c.l.b16 %v702
        %v1477 = vunpack.c.h.b16 %v702
        %v1478 = vunpack.c.l.b16 %v703
        %v1479 = vunpack.c.h.b16 %v703
        %v1480 = vunpack.c.l.b16 %v704
        %v1481 = vunpack.c.h.b16 %v704
        %v1482 = vunpack.c.l.b16 %v705
        %v1483 = vunpack.c.h.b16 %v705
        %v1484 = vunpack.c.l.b16 %v706
        %v1485 = vunpack.c.h.b16 %v706
        %v1486 = vunpack.c.l.b16 %v707
        %v1487 = vunpack.c.h.b16 %v707
        %v1488 = vunpack.c.l.b16 %v708
        %v1489 = vunpack.c.h.b16 %v708
        %v1490 = vunpack.c.l.b16 %v709
        %v1491 = vunpack.c.h.b16 %v709
        %v1492 = vunpack.c.l.b16 %v710
        %v1493 = vunpack.c.h.b16 %v710
        %v1494 = vunpack.c.l.b16 %v711
        %v1495 = vunpack.c.h.b16 %v711
        %v1496 = vunpack.c.l.b16 %v712
        %v1497 = vunpack.c.h.b16 %v712
        %v1498 = vunpack.c.l.b16 %v713
        %v1499 = vunpack.c.h.b16 %v713
        %v1500 = vunpack.c.l.b16 %v714
        %v1501 = vunpack.c.h.b16 %v714
        %v1502 = vunpack.c.l.b16 %v715
        %v1503 = vunpack.c.h.b16 %v715
        %v1504 = vunpack.c.l.b16 %v716
        %v1505 = vunpack.c.h.b16 %v716
        %v1506 = vunpack.c.l.b16 %v717
        %v1507 = vunpack.c.h.b16 %v717
        %v1508 = vunpack.c.l.b16 %v718
        %v1509 = vunpack.c.h.b16 %v718
        %v1510 = vunpack.c.l.b16 %v719
        %v1511 = vunpack.c.h.b16 %v719
        %v1512 = vunpack.c.l.b16 %v720
        %v1513 = vunpack.c.h.b16 %v720
        %v1514 = vunpack.c.l.b16 %v721
        %v1515 = vunpack.c.h.b16 %v721
        %v1516 = vunpack.c.l.b16 %v722
        %v1517 = vunpack.c.h.b16 %v722
        %v1518 = vunpack.c.l.b16 %v723
        %v1519 = vunpack.c.h.b16 %v723
        %v1520 = vunpack.c.l.b16 %v724
        %v1521 = vunpack.c.h.b16 %v724
        %v1522 = vunpack.c.l.b16 %v725
        %v1523 = vunpack.c.h.b16 %v725
        %v1524 = vunpack.c.l.b16 %v726
        %v1525 = vunpack.c.h.b16 %v726
        %v1526 = vunpack.c.l.b16 %v727
        %v1527 = vunpack.c.h.b16 %v727
        %v1528 = vunpack.c.l.b16 %v728
        %v1529 = vunpack.c.h.b16 %v728
        %v1530 = vunpack.c.l.b16 %v729
        %v1531 = vunpack.c.h.b16 %v729
        %v1532 = vunpack.c.l.b16 %v730
        %v1533 = vunpack.c.h.b16 %v730
        %v1534 = vunpack.c.l.b16 %v731
        %v1535 = vunpack.c.h.b16 %v731
        %v1536 = vunpack.c.l.b16 %v732
        %v1537 = vunpack.c.h.b16 %v732
        %v1538 = vunpack.c.l.b16 %v733
        %v1539 = vunpack.c.h.b16 %v733
        %v1540 = vunpack.c.l.b16 %v734
        %v1541 = vunpack.c.h.b16 %v734
        %v1542 = vunpack.c.l.b16 %v735
        %v1543 = vunpack.c.h.b16 %v735
        %v1544 = vunpack.c.l.b16 %v736
        %v1545 = vunpack.c.h.b16 %v736
        %v1546 = vunpack.c.l.b16 %v737
        %v1547 = vunpack.c.h.b16 %v737
        %v1548 = vunpack.c.l.b16 %v738
        %v1549 = vunpack.c.h.b16 %v738
        %v1550 = vunpack.c.l.b16 %v739
        %v1551 = vunpack.c.h.b16 %v739
        %v1552 = vunpack.c.l.b16 %v740
        %v1553 = vunpack.c.h.b16 %v740
        %v1554 = vunpack.c.l.b16 %v741
        %v1555 = vunpack.c.h.b16 %v741
        %v1556 = vunpack.c.l.b16 %v742
        %v1557 = vunpack.c.h.b16 %v742
        %v1558 = vunpack.c.l.b16 %v743
        %v1559 = vunpack.c.h.b16 %v743
        %v1560 = vunpack.c.l.b16 %v744
        %v1561 = vunpack.c.h.b16 %v744
        %v1562 = vunpack.c.l.b16 %v745
        %v1563 = vunpack.c.h.b16 %v745
        %v1564 = vunpack.c.l.b16 %v746
        %v1565 = vunpack.c.h.b16 %v746
        %v1566 = vunpack.c.l.b16 %v747
        %v1567 = vunpack.c.h.b16 %v747
        %v1568 = vunpack.c.l.b16 %v748
        %v1569 = vunpack.c.h.b16 %v748
        %v1570 = vunpack.c.l.b16 %v749
        %v1571 = vunpack.c.h.b16 %v749
        %v1572 = vunpack.c.l.b16 %v750
        %v1573 = vunpack.c.h.b16 %v750
        %v1574 = vunpack.c.l.b16 %v751
        %v1575 = vunpack.c.h.b16 %v751
        %v1576 = vunpack.c.l.b16 %v752
        %v1577 = vunpack.c.h.b16 %v752
        %v1578 = vunpack.c.l.b16 %v753
        %v1579 = vunpack.c.h.b16 %v753
        %v1580 = vunpack.c.l.b16 %v754
        %v1581 = vunpack.c.h.b16 %v754
        %v1582 = vunpack.c.l.b16 %v755
        %v1583 = vunpack.c.h.b16 %v755
        %v1584 = vunpack.c.l.b16 %v756
        %v1585 = vunpack.c.h.b16 %v756
        %v1586 = vunpack.c.l.b16 %v757
        %v1587 = vunpack.c.h.b16 %v757
        %v1588 = vpack.c.b16 %v1080, %v1076
        %v1589 = vpack.c.b16 %v1081, %v1077
        %v1590 = vpack.c.b16 %v1082, %v1078
        %v1591 = vpack.c.b16 %v1083, %v1079
        %v1592 = vpack.c.b16 %v1088, %v1084
        %v1593 = vpack.c.b16 %v1089, %v1085
        %v1594 = vpack.c.b16 %v1090, %v1086
        %v1595 = vpack.c.b16 %v1091, %v1087
        %v1596 = vpack.c.b16 %v1096, %v1092
        %v1597 = vpack.c.b16 %v1097, %v1093
        %v1598 = vpack.c.b16 %v1098, %v1094
        %v1599 = vpack.c.b16 %v1099, %v1095
        %v1600 = vpack.c.b16 %v1104, %v1100
        %v1601 = vpack.c.b16 %v1105, %v1101
        %v1602 = vpack.c.b16 %v1106, %v1102
        %v1603 = vpack.c.b16 %v1107, %v1103
        %v1604 = vpack.c.b16 %v1112, %v1108
        %v1605 = vpack.c.b16 %v1113, %v1109
        %v1606 = vpack.c.b16 %v1114, %v1110
        %v1607 = vpack.c.b16 %v1115, %v1111
        %v1608 = vpack.c.b16 %v1120, %v1116
        %v1609 = vpack.c.b16 %v1121, %v1117
        %v1610 = vpack.c.b16 %v1122, %v1118
        %v1611 = vpack.c.b16 %v1123, %v1119
        %v1612 = vpack.c.b16 %v1128, %v1124
        %v1613 = vpack.c.b16 %v1129, %v1125
        %v1614 = vpack.c.b16 %v1130, %v1126
        %v1615 = vpack.c.b16 %v1131, %v1127
        %v1616 = vpack.c.b16 %v1136, %v1132
        %v1617 = vpack.c.b16 %v1137, %v1133
        %v1618 = vpack.c.b16 %v1138, %v1134
        %v1619 = vpack.c.b16 %v1139, %v1135
        %v1620 = vpack.c.b16 %v1144, %v1140
        %v1621 = vpack.c.b16 %v1145, %v1141
        %v1622 = vpack.c.b16 %v1146, %v1142
        %v1623 = vpack.c.b16 %v1147, %v1143
        %v1624 = vpack.c.b16 %v1152, %v1148
        %v1625 = vpack.c.b16 %v1153, %v1149
        %v1626 = vpack.c.b16 %v1154, %v1150
        %v1627 = vpack.c.b16 %v1155, %v1151
        %v1628 = vpack.c.b16 %v1160, %v1156
        %v1629 = vpack.c.b16 %v1161, %v1157
        %v1630 = vpack.c.b16 %v1162, %v1158
        %v1631 = vpack.c.b16 %v1163, %v1159
        %v1632 = vpack.c.b16 %v1168, %v1164
        %v1633 = vpack.c.b16 %v1169, %v1165
        %v1634 = vpack.c.b16 %v1170, %v1166
        %v1635 = vpack.c.b16 %v1171, %v1167
        %v1636 = vpack.c.b16 %v1176, %v1172
        %v1637 = vpack.c.b16 %v1177, %v1173
        %v1638 = vpack.c.b16 %v1178, %v1174
        %v1639 = vpack.c.b16 %v1179, %v1175
        %v1640 = vpack.c.b16 %v1184, %v1180
        %v1641 = vpack.c.b16 %v1185, %v1181
        %v1642 = vpack.c.b16 %v1186, %v1182
        %v1643 = vpack.c.b16 %v1187, %v1183
        %v1644 = vpack.c.b16 %v1192, %v1188
        %v1645 = vpack.c.b16 %v1193, %v1189
        %v1646 = vpack.c.b16 %v1194, %v1190
        %v1647 = vpack.c.b16 %v1195, %v1191
        %v1648 = vpack.c.b16 %v1200, %v1196
        %v1649 = vpack.c.b16 %v1201, %v1197
        %v1650 = vpack.c.b16 %v1202, %v1198
        %v1651 = vpack.c.b16 %v1203, %v1199
        %v1652 = vpack.c.b16 %v1208, %v1204
        %v1653 = vpack.c.b16 %v1209, %v1205
        %v1654 = vpack.c.b16 %v1210, %v1206
        %v1655 = vpack.c.b16 %v1211, %v1207
        %v1656 = vpack.c.b16 %v1216, %v1212
        %v1657 = vpack.c.b16 %v1217, %v1213
        %v1658 = vpack.c.b16 %v1218, %v1214
        %v1659 = vpack.c.b16 %v1219, %v1215
        %v1660 = vpack.c.b16 %v1224, %v1220
        %v1661 = vpack.c.b16 %v1225, %v1221
        %v1662 = vpack.c.b16 %v1226, %v1222
        %v1663 = vpack.c.b16 %v1227, %v1223
        %v1664 = vpack.c.b16 %v1232, %v1228
        %v1665 = vpack.c.b16 %v1233, %v1229
        %v1666 = vpack.c.b16 %v1234, %v1230
        %v1667 = vpack.c.b16 %v1235, %v1231
        %v1668 = vpack.c.b16 %v1240, %v1236
        %v1669 = vpack.c.b16 %v1241, %v1237
        %v1670 = vpack.c.b16 %v1242, %v1238
        %v1671 = vpack.c.b16 %v1243, %v1239
        %v1672 = vpack.c.b16 %v1248, %v1244
        %v1673 = vpack.c.b16 %v1249, %v1245
        %v1674 = vpack.c.b16 %v1250, %v1246
        %v1675 = vpack.c.b16 %v1251, %v1247
        %v1676 = vpack.c.b16 %v1256, %v1252
        %v1677 = vpack.c.b16 %v1257, %v1253
        %v1678 = vpack.c.b16 %v1258, %v1254
        %v1679 = vpack.c.b16 %v1259, %v1255
        %v1680 = vpack.c.b16 %v1264, %v1260
        %v1681 = vpack.c.b16 %v1265, %v1261
        %v1682 = vpack.c.b16 %v1266, %v1262
        %v1683 = vpack.c.b16 %v1267, %v1263
        %v1684 = vpack.c.b16 %v1272, %v1268
        %v1685 = vpack.c.b16 %v1273, %v1269
        %v1686 = vpack.c.b16 %v1274, %v1270
        %v1687 = vpack.c.b16 %v1275, %v1271
        %v1688 = vpack.c.b16 %v1280, %v1276
        %v1689 = vpack.c.b16 %v1281, %v1277
        %v1690 = vpack.c.b16 %v1282, %v1278
        %v1691 = vpack.c.b16 %v1283, %v1279
        %v1692 = vpack.c.b16 %v1288, %v1284
        %v1693 = vpack.c.b16 %v1289, %v1285
        %v1694 = vpack.c.b16 %v1290, %v1286
        %v1695 = vpack.c.b16 %v1291, %v1287
        %v1696 = vpack.c.b16 %v1296, %v1292
        %v1697 = vpack.c.b16 %v1297, %v1293
        %v1698 = vpack.c.b16 %v1298, %v1294
        %v1699 = vpack.c.b16 %v1299, %v1295
        %v1700 = vpack.c.b16 %v1304, %v1300
        %v1701 = vpack.c.b16 %v1305, %v1301
        %v1702 = vpack.c.b16 %v1306, %v1302
        %v1703 = vpack.c.b16 %v1307, %v1303
        %v1704 = vpack.c.b16 %v1312, %v1308
        %v1705 = vpack.c.b16 %v1313, %v1309
        %v1706 = vpack.c.b16 %v1314, %v1310
        %v1707 = vpack.c.b16 %v1315, %v1311
        %v1708 = vpack.c.b16 %v1320, %v1316
        %v1709 = vpack.c.b16 %v1321, %v1317
        %v1710 = vpack.c.b16 %v1322, %v1318
        %v1711 = vpack.c.b16 %v1323, %v1319
        %v1712 = vpack.c.b16 %v1328, %v1324
        %v1713 = vpack.c.b16 %v1329, %v1325
        %v1714 = vpack.c.b16 %v1330, %v1326
        %v1715 = vpack.c.b16 %v1331, %v1327
        %v1716 = vpack.c.b16 %v1336, %v1332
        %v1717 = vpack.c.b16 %v1337, %v1333
        %v1718 = vpack.c.b16 %v1338, %v1334
        %v1719 = vpack.c.b16 %v1339, %v1335
        %v1720 = vpack.c.b16 %v1344, %v1340
        %v1721 = vpack.c.b16 %v1345, %v1341
        %v1722 = vpack.c.b16 %v1346, %v1342
        %v1723 = vpack.c.b16 %v1347, %v1343
        %v1724 = vpack.c.b16 %v1352, %v1348
        %v1725 = vpack.c.b16 %v1353, %v1349
        %v1726 = vpack.c.b16 %v1354, %v1350
        %v1727 = vpack.c.b16 %v1355, %v1351
        %v1728 = vpack.c.b16 %v1360, %v1356
        %v1729 = vpack.c.b16 %v1361, %v1357
        %v1730 = vpack.c.b16 %v1362, %v1358
        %v1731 = vpack.c.b16 %v1363, %v1359
        %v1732 = vpack.c.b16 %v1368, %v1364
        %v1733 = vpack.c.b16 %v1369, %v1365
        %v1734 = vpack.c.b16 %v1370, %v1366
        %v1735 = vpack.c.b16 %v1371, %v1367
        %v1736 = vpack.c.b16 %v1376, %v1372
        %v1737 = vpack.c.b16 %v1377, %v1373
        %v1738 = vpack.c.b16 %v1378, %v1374
        %v1739 = vpack.c.b16 %v1379, %v1375
        %v1740 = vpack.c.b16 %v1384, %v1380
        %v1741 = vpack.c.b16 %v1385, %v1381
        %v1742 = vpack.c.b16 %v1386, %v1382
        %v1743 = vpack.c.b16 %v1387, %v1383
        %v1744 = vpack.c.b16 %v1392, %v1388
        %v1745 = vpack.c.b16 %v1393, %v1389
        %v1746 = vpack.c.b16 %v1394, %v1390
        %v1747 = vpack.c.b16 %v1395, %v1391
        %v1748 = vpack.c.b16 %v1400, %v1396
        %v1749 = vpack.c.b16 %v1401, %v1397
        %v1750 = vpack.c.b16 %v1402, %v1398
        %v1751 = vpack.c.b16 %v1403, %v1399
        %v1752 = vpack.c.b16 %v1408, %v1404
        %v1753 = vpack.c.b16 %v1409, %v1405
        %v1754 = vpack.c.b16 %v1410, %v1406
        %v1755 = vpack.c.b16 %v1411, %v1407
        %v1756 = vpack.c.b16 %v1416, %v1412
        %v1757 = vpack.c.b16 %v1417, %v1413
        %v1758 = vpack.c.b16 %v1418, %v1414
        %v1759 = vpack.c.b16 %v1419, %v1415
        %v1760 = vpack.c.b16 %v1424, %v1420
        %v1761 = vpack.c.b16 %v1425, %v1421
        %v1762 = vpack.c.b16 %v1426, %v1422
        %v1763 = vpack.c.b16 %v1427, %v1423
        %v1764 = vpack.c.b16 %v1432, %v1428
        %v1765 = vpack.c.b16 %v1433, %v1429
        %v1766 = vpack.c.b16 %v1434, %v1430
        %v1767 = vpack.c.b16 %v1435, %v1431
        %v1768 = vpack.c.b16 %v1440, %v1436
        %v1769 = vpack.c.b16 %v1441, %v1437
        %v1770 = vpack.c.b16 %v1442, %v1438
        %v1771 = vpack.c.b16 %v1443, %v1439
        %v1772 = vpack.c.b16 %v1448, %v1444
        %v1773 = vpack.c.b16 %v1449, %v1445
        %v1774 = vpack.c.b16 %v1450, %v1446
        %v1775 = vpack.c.b16 %v1451, %v1447
        %v1776 = vpack.c.b16 %v1456, %v1452
        %v1777 = vpack.c.b16 %v1457, %v1453
        %v1778 = vpack.c.b16 %v1458, %v1454
        %v1779 = vpack.c.b16 %v1459, %v1455
        %v1780 = vpack.c.b16 %v1464, %v1460
        %v1781 = vpack.c.b16 %v1465, %v1461
        %v1782 = vpack.c.b16 %v1466, %v1462
        %v1783 = vpack.c.b16 %v1467, %v1463
        %v1784 = vpack.c.b16 %v1472, %v1468
        %v1785 = vpack.c.b16 %v1473, %v1469
        %v1786 = vpack.c.b16 %v1474, %v1470
        %v1787 = vpack.c.b16 %v1475, %v1471
        %v1788 = vpack.c.b16 %v1480, %v1476
        %v1789 = vpack.c.b16 %v1481, %v1477
        %v1790 = vpack.c.b16 %v1482, %v1478
        %v1791 = vpack.c.b16 %v1483, %v1479
        %v1792 = vpack.c.b16 %v1488, %v1484
        %v1793 = vpack.c.b16 %v1489, %v1485
        %v1794 = vpack.c.b16 %v1490, %v1486
        %v1795 = vpack.c.b16 %v1491, %v1487
        %v1796 = vpack.c.b16 %v1496, %v1492
        %v1797 = vpack.c.b16 %v1497, %v1493
        %v1798 = vpack.c.b16 %v1498, %v1494
        %v1799 = vpack.c.b16 %v1499, %v1495
        %v1800 = vpack.c.b16 %v1504, %v1500
        %v1801 = vpack.c.b16 %v1505, %v1501
        %v1802 = vpack.c.b16 %v1506, %v1502
        %v1803 = vpack.c.b16 %v1507, %v1503
        %v1804 = vpack.c.b16 %v1512, %v1508
        %v1805 = vpack.c.b16 %v1513, %v1509
        %v1806 = vpack.c.b16 %v1514, %v1510
        %v1807 = vpack.c.b16 %v1515, %v1511
        %v1808 = vpack.c.b16 %v1520, %v1516
        %v1809 = vpack.c.b16 %v1521, %v1517
        %v1810 = vpack.c.b16 %v1522, %v1518
        %v1811 = vpack.c.b16 %v1523, %v1519
        %v1812 = vpack.c.b16 %v1528, %v1524
        %v1813 = vpack.c.b16 %v1529, %v1525
        %v1814 = vpack.c.b16 %v1530, %v1526
        %v1815 = vpack.c.b16 %v1531, %v1527
        %v1816 = vpack.c.b16 %v1536, %v1532
        %v1817 = vpack.c.b16 %v1537, %v1533
        %v1818 = vpack.c.b16 %v1538, %v1534
        %v1819 = vpack.c.b16 %v1539, %v1535
        %v1820 = vpack.c.b16 %v1544, %v1540
        %v1821 = vpack.c.b16 %v1545, %v1541
        %v1822 = vpack.c.b16 %v1546, %v1542
        %v1823 = vpack.c.b16 %v1547, %v1543
        %v1824 = vpack.c.b16 %v1552, %v1548
        %v1825 = vpack.c.b16 %v1553, %v1549
        %v1826 = vpack.c.b16 %v1554, %v1550
        %v1827 = vpack.c.b16 %v1555, %v1551
        %v1828 = vpack.c.b16 %v1560, %v1556
        %v1829 = vpack.c.b16 %v1561, %v1557
        %v1830 = vpack.c.b16 %v1562, %v1558
        %v1831 = vpack.c.b16 %v1563, %v1559
        %v1832 = vpack.c.b16 %v1568, %v1564
        %v1833 = vpack.c.b16 %v1569, %v1565
        %v1834 = vpack.c.b16 %v1570, %v1566
        %v1835 = vpack.c.b16 %v1571, %v1567
        %v1836 = vpack.c.b16 %v1576, %v1572
        %v1837 = vpack.c.b16 %v1577, %v1573
        %v1838 = vpack.c.b16 %v1578, %v1574
        %v1839 = vpack.c.b16 %v1579, %v1575
        %v1840 = vpack.c.b16 %v1584, %v1580
        %v1841 = vpack.c.b16 %v1585, %v1581
        %v1842 = vpack.c.b16 %v1586, %v1582
        %v1843 = vpack.c.b16 %v1587, %v1583
        %2100 = vmatprep.subr.bf16.mxu0 %v1617
        %2101 = vmatpush1.bf16.msra.mxu0 %v1616
        %2102 = vmatprep.subr.bf16.mxu0 %v1613
        %2103 = vmatpush1.bf16.msra.mxu0 %v1612
        %2104 = vmatprep.subr.bf16.mxu0 %v1609
        %2105 = vmatpush1.bf16.msra.mxu0 %v1608
        %2106 = vmatprep.subr.bf16.mxu0 %v1605
        %2107 = vmatpush1.bf16.msra.mxu0 %v1604
        %2108 = vmatprep.subr.bf16.mxu0 %v1601
        %2109 = vmatpush1.bf16.msra.mxu0 %v1600
        %2110 = vmatprep.subr.bf16.mxu0 %v1597
        %2111 = vmatpush1.bf16.msra.mxu0 %v1596
        %2112 = vmatprep.subr.bf16.mxu0 %v1593
        %2113 = vmatpush1.bf16.msra.mxu0 %v1592
        %2114 = vmatprep.subr.bf16.mxu0 %v1589
        %2115 = vmatpush1.bf16.msra.mxu0 %v1588
        %2116 = vmatprep.subr.bf16.mxu0 %v1649
        %2117 = vmatpush2.bf16.msra.mxu0 %v1648
        %2118 = vmatprep.subr.bf16.mxu0 %v1645
        %2119 = vmatpush2.bf16.msra.mxu0 %v1644
        %2120 = vmatprep.subr.bf16.mxu0 %v1641
        %2121 = vmatpush2.bf16.msra.mxu0 %v1640
        %2122 = vmatprep.subr.bf16.mxu0 %v1637
        %2123 = vmatpush2.bf16.msra.mxu0 %v1636
        %2124 = vmatprep.subr.bf16.mxu0 %v1633
        %2125 = vmatpush2.bf16.msra.mxu0 %v1632
        %2126 = vmatprep.subr.bf16.mxu0 %v1629
        %2127 = vmatpush2.bf16.msra.mxu0 %v1628
        %2128 = vmatprep.subr.bf16.mxu0 %v1625
        %2129 = vmatpush2.bf16.msra.mxu0 %v1624
        %2130 = vmatprep.subr.bf16.mxu0 %v1621
        %2131 = vmatpush2.bf16.msra.mxu0 %v1620
        %2132 = vmatprep.mubr.bf16.mxu0 %v805
        %2133 = vmatmul.mubr.bf16.gmra.mxu0 %v804
        %v2134 = vpop.f32.mrf.mxu0
        %v2135 = vadd.f32 %v763, %v2134
        %v2136 = vpop.f32.mrf.mxu0
        %v2137 = vadd.f32 %v767, %v2136
        %v2138 = vpop.f32.mrf.mxu0
        %v2139 = vadd.f32 %v763, %v2138
        %v2140 = vpop.f32.mrf.mxu0
        %v2141 = vadd.f32 %v767, %v2140
        %2142 = vdwg.mxu0
        %2143 = vmatprep.subr.bf16.mxu0 %v1681
        %2144 = vmatpush1.bf16.msra.mxu0 %v1680
        %2145 = vmatprep.subr.bf16.mxu0 %v1677
        %2146 = vmatpush1.bf16.msra.mxu0 %v1676
        %2147 = vmatprep.subr.bf16.mxu0 %v1673
        %2148 = vmatpush1.bf16.msra.mxu0 %v1672
        %2149 = vmatprep.subr.bf16.mxu0 %v1669
        %2150 = vmatpush1.bf16.msra.mxu0 %v1668
        %2151 = vmatprep.subr.bf16.mxu0 %v1665
        %2152 = vmatpush1.bf16.msra.mxu0 %v1664
        %2153 = vmatprep.subr.bf16.mxu0 %v1661
        %2154 = vmatpush1.bf16.msra.mxu0 %v1660
        %2155 = vmatprep.subr.bf16.mxu0 %v1657
        %2156 = vmatpush1.bf16.msra.mxu0 %v1656
        %2157 = vmatprep.subr.bf16.mxu0 %v1653
        %2158 = vmatpush1.bf16.msra.mxu0 %v1652
        %2159 = vmatprep.subr.bf16.mxu0 %v1713
        %2160 = vmatpush2.bf16.msra.mxu0 %v1712
        %2161 = vmatprep.subr.bf16.mxu0 %v1709
        %2162 = vmatpush2.bf16.msra.mxu0 %v1708
        %2163 = vmatprep.subr.bf16.mxu0 %v1705
        %2164 = vmatpush2.bf16.msra.mxu0 %v1704
        %2165 = vmatprep.subr.bf16.mxu0 %v1701
        %2166 = vmatpush2.bf16.msra.mxu0 %v1700
        %2167 = vmatprep.subr.bf16.mxu0 %v1697
        %2168 = vmatpush2.bf16.msra.mxu0 %v1696
        %2169 = vmatprep.subr.bf16.mxu0 %v1693
        %2170 = vmatpush2.bf16.msra.mxu0 %v1692
        %2171 = vmatprep.subr.bf16.mxu0 %v1689
        %2172 = vmatpush2.bf16.msra.mxu0 %v1688
        %2173 = vmatprep.subr.bf16.mxu0 %v1685
        %2174 = vmatpush2.bf16.msra.mxu0 %v1684
        %2175 = vmatprep.mubr.bf16.mxu0 %v807
        %2176 = vmatmul.mubr.bf16.gmra.mxu0 %v806
        %v2177 = vpop.f32.mrf.mxu0
        %v2178 = vadd.f32 %v2135, %v2177
        %v2179 = vpop.f32.mrf.mxu0
        %v2180 = vadd.f32 %v2137, %v2179
        %v2181 = vpop.f32.mrf.mxu0
        %v2182 = vadd.f32 %v2139, %v2181
        %v2183 = vpop.f32.mrf.mxu0
        %v2184 = vadd.f32 %v2141, %v2183
        %2185 = vdwg.mxu0
        %2186 = vmatprep.subr.bf16.mxu0 %v1745
        %2187 = vmatpush1.bf16.msra.mxu0 %v1744
        %2188 = vmatprep.subr.bf16.mxu0 %v1741
        %2189 = vmatpush1.bf16.msra.mxu0 %v1740
        %2190 = vmatprep.subr.bf16.mxu0 %v1737
        %2191 = vmatpush1.bf16.msra.mxu0 %v1736
        %2192 = vmatprep.subr.bf16.mxu0 %v1733
        %2193 = vmatpush1.bf16.msra.mxu0 %v1732
        %2194 = vmatprep.subr.bf16.mxu0 %v1729
        %2195 = vmatpush1.bf16.msra.mxu0 %v1728
        %2196 = vmatprep.subr.bf16.mxu0 %v1725
        %2197 = vmatpush1.bf16.msra.mxu0 %v1724
        %2198 = vmatprep.subr.bf16.mxu0 %v1721
        %2199 = vmatpush1.bf16.msra.mxu0 %v1720
        %2200 = vmatprep.subr.bf16.mxu0 %v1717
        %2201 = vmatpush1.bf16.msra.mxu0 %v1716
        %2202 = vmatprep.subr.bf16.mxu0 %v1777
        %2203 = vmatpush2.bf16.msra.mxu0 %v1776
        %2204 = vmatprep.subr.bf16.mxu0 %v1773
        %2205 = vmatpush2.bf16.msra.mxu0 %v1772
        %2206 = vmatprep.subr.bf16.mxu0 %v1769
        %2207 = vmatpush2.bf16.msra.mxu0 %v1768
        %2208 = vmatprep.subr.bf16.mxu0 %v1765
        %2209 = vmatpush2.bf16.msra.mxu0 %v1764
        %2210 = vmatprep.subr.bf16.mxu0 %v1761
        %2211 = vmatpush2.bf16.msra.mxu0 %v1760
        %2212 = vmatprep.subr.bf16.mxu0 %v1757
        %2213 = vmatpush2.bf16.msra.mxu0 %v1756
        %2214 = vmatprep.subr.bf16.mxu0 %v1753
        %2215 = vmatpush2.bf16.msra.mxu0 %v1752
        %2216 = vmatprep.subr.bf16.mxu0 %v1749
        %2217 = vmatpush2.bf16.msra.mxu0 %v1748
        %2218 = vmatprep.mubr.bf16.mxu0 %v809
        %2219 = vmatmul.mubr.bf16.gmra.mxu0 %v808
        %v2220 = vpop.f32.mrf.mxu0
        %v2221 = vadd.f32 %v2178, %v2220
        %v2222 = vpop.f32.mrf.mxu0
        %v2223 = vadd.f32 %v2180, %v2222
        %v2224 = vpop.f32.mrf.mxu0
        %v2225 = vadd.f32 %v2182, %v2224
        %v2226 = vpop.f32.mrf.mxu0
        %v2227 = vadd.f32 %v2184, %v2226
        %2228 = vdwg.mxu0
        %2229 = vmatprep.subr.bf16.mxu0 %v1809
        %2230 = vmatpush1.bf16.msra.mxu0 %v1808
        %2231 = vmatprep.subr.bf16.mxu0 %v1805
        %2232 = vmatpush1.bf16.msra.mxu0 %v1804
        %2233 = vmatprep.subr.bf16.mxu0 %v1801
        %2234 = vmatpush1.bf16.msra.mxu0 %v1800
        %2235 = vmatprep.subr.bf16.mxu0 %v1797
        %2236 = vmatpush1.bf16.msra.mxu0 %v1796
        %2237 = vmatprep.subr.bf16.mxu0 %v1793
        %2238 = vmatpush1.bf16.msra.mxu0 %v1792
        %2239 = vmatprep.subr.bf16.mxu0 %v1789
        %2240 = vmatpush1.bf16.msra.mxu0 %v1788
        %2241 = vmatprep.subr.bf16.mxu0 %v1785
        %2242 = vmatpush1.bf16.msra.mxu0 %v1784
        %2243 = vmatprep.subr.bf16.mxu0 %v1781
        %2244 = vmatpush1.bf16.msra.mxu0 %v1780
        %2245 = vmatprep.subr.bf16.mxu0 %v1841
        %2246 = vmatpush2.bf16.msra.mxu0 %v1840
        %2247 = vmatprep.subr.bf16.mxu0 %v1837
        %2248 = vmatpush2.bf16.msra.mxu0 %v1836
        %2249 = vmatprep.subr.bf16.mxu0 %v1833
        %2250 = vmatpush2.bf16.msra.mxu0 %v1832
        %2251 = vmatprep.subr.bf16.mxu0 %v1829
        %2252 = vmatpush2.bf16.msra.mxu0 %v1828
        %2253 = vmatprep.subr.bf16.mxu0 %v1825
        %2254 = vmatpush2.bf16.msra.mxu0 %v1824
        %2255 = vmatprep.subr.bf16.mxu0 %v1821
        %2256 = vmatpush2.bf16.msra.mxu0 %v1820
        %2257 = vmatprep.subr.bf16.mxu0 %v1817
        %2258 = vmatpush2.bf16.msra.mxu0 %v1816
        %2259 = vmatprep.subr.bf16.mxu0 %v1813
        %2260 = vmatpush2.bf16.msra.mxu0 %v1812
        %2261 = vmatprep.mubr.bf16.mxu0 %v811
        %2262 = vmatmul.mubr.bf16.gmra.mxu0 %v810
        %v2263 = vpop.f32.mrf.mxu0
        %v2264 = vadd.f32 %v2221, %v2263
        %v2265 = vpop.f32.mrf.mxu0
        %v2266 = vadd.f32 %v2223, %v2265
        %v2267 = vpop.f32.mrf.mxu0
        %v2268 = vadd.f32 %v2225, %v2267
        %v2269 = vpop.f32.mrf.mxu0
        %v2270 = vadd.f32 %v2227, %v2269
        %2271 = vdwg.mxu0
        %2272 = vmatprep.subr.bf16.mxu0 %v1619
        %2273 = vmatpush1.bf16.msra.mxu0 %v1618
        %2274 = vmatprep.subr.bf16.mxu0 %v1615
        %2275 = vmatpush1.bf16.msra.mxu0 %v1614
        %2276 = vmatprep.subr.bf16.mxu0 %v1611
        %2277 = vmatpush1.bf16.msra.mxu0 %v1610
        %2278 = vmatprep.subr.bf16.mxu0 %v1607
        %2279 = vmatpush1.bf16.msra.mxu0 %v1606
        %2280 = vmatprep.subr.bf16.mxu0 %v1603
        %2281 = vmatpush1.bf16.msra.mxu0 %v1602
        %2282 = vmatprep.subr.bf16.mxu0 %v1599
        %2283 = vmatpush1.bf16.msra.mxu0 %v1598
        %2284 = vmatprep.subr.bf16.mxu0 %v1595
        %2285 = vmatpush1.bf16.msra.mxu0 %v1594
        %2286 = vmatprep.subr.bf16.mxu0 %v1591
        %2287 = vmatpush1.bf16.msra.mxu0 %v1590
        %2288 = vmatprep.subr.bf16.mxu0 %v1651
        %2289 = vmatpush2.bf16.msra.mxu0 %v1650
        %2290 = vmatprep.subr.bf16.mxu0 %v1647
        %2291 = vmatpush2.bf16.msra.mxu0 %v1646
        %2292 = vmatprep.subr.bf16.mxu0 %v1643
        %2293 = vmatpush2.bf16.msra.mxu0 %v1642
        %2294 = vmatprep.subr.bf16.mxu0 %v1639
        %2295 = vmatpush2.bf16.msra.mxu0 %v1638
        %2296 = vmatprep.subr.bf16.mxu0 %v1635
        %2297 = vmatpush2.bf16.msra.mxu0 %v1634
        %2298 = vmatprep.subr.bf16.mxu0 %v1631
        %2299 = vmatpush2.bf16.msra.mxu0 %v1630
        %2300 = vmatprep.subr.bf16.mxu0 %v1627
        %2301 = vmatpush2.bf16.msra.mxu0 %v1626
        %2302 = vmatprep.subr.bf16.mxu0 %v1623
        %2303 = vmatpush2.bf16.msra.mxu0 %v1622
        %2304 = vmatprep.mubr.bf16.mxu0 %v805
        %2305 = vmatmul.mubr.bf16.gmra.mxu0 %v804
        %v2306 = vpop.f32.mrf.mxu0
        %v2307 = vadd.f32 %v771, %v2306
        %v2308 = vpop.f32.mrf.mxu0
        %v2309 = vadd.f32 %v775, %v2308
        %v2310 = vpop.f32.mrf.mxu0
        %v2311 = vadd.f32 %v771, %v2310
        %v2312 = vpop.f32.mrf.mxu0
        %v2313 = vadd.f32 %v775, %v2312
        %2314 = vdwg.mxu0
        %2315 = vmatprep.subr.bf16.mxu0 %v1683
        %2316 = vmatpush1.bf16.msra.mxu0 %v1682
        %2317 = vmatprep.subr.bf16.mxu0 %v1679
        %2318 = vmatpush1.bf16.msra.mxu0 %v1678
        %2319 = vmatprep.subr.bf16.mxu0 %v1675
        %2320 = vmatpush1.bf16.msra.mxu0 %v1674
        %2321 = vmatprep.subr.bf16.mxu0 %v1671
        %2322 = vmatpush1.bf16.msra.mxu0 %v1670
        %2323 = vmatprep.subr.bf16.mxu0 %v1667
        %2324 = vmatpush1.bf16.msra.mxu0 %v1666
        %2325 = vmatprep.subr.bf16.mxu0 %v1663
        %2326 = vmatpush1.bf16.msra.mxu0 %v1662
        %2327 = vmatprep.subr.bf16.mxu0 %v1659
        %2328 = vmatpush1.bf16.msra.mxu0 %v1658
        %2329 = vmatprep.subr.bf16.mxu0 %v1655
        %2330 = vmatpush1.bf16.msra.mxu0 %v1654
        %2331 = vmatprep.subr.bf16.mxu0 %v1715
        %2332 = vmatpush2.bf16.msra.mxu0 %v1714
        %2333 = vmatprep.subr.bf16.mxu0 %v1711
        %2334 = vmatpush2.bf16.msra.mxu0 %v1710
        %2335 = vmatprep.subr.bf16.mxu0 %v1707
        %2336 = vmatpush2.bf16.msra.mxu0 %v1706
        %2337 = vmatprep.subr.bf16.mxu0 %v1703
        %2338 = vmatpush2.bf16.msra.mxu0 %v1702
        %2339 = vmatprep.subr.bf16.mxu0 %v1699
        %2340 = vmatpush2.bf16.msra.mxu0 %v1698
        %2341 = vmatprep.subr.bf16.mxu0 %v1695
        %2342 = vmatpush2.bf16.msra.mxu0 %v1694
        %2343 = vmatprep.subr.bf16.mxu0 %v1691
        %2344 = vmatpush2.bf16.msra.mxu0 %v1690
        %2345 = vmatprep.subr.bf16.mxu0 %v1687
        %2346 = vmatpush2.bf16.msra.mxu0 %v1686
        %2347 = vmatprep.mubr.bf16.mxu0 %v807
        %2348 = vmatmul.mubr.bf16.gmra.mxu0 %v806
        %v2349 = vpop.f32.mrf.mxu0
        %v2350 = vadd.f32 %v2307, %v2349
        %v2351 = vpop.f32.mrf.mxu0
        %v2352 = vadd.f32 %v2309, %v2351
        %v2353 = vpop.f32.mrf.mxu0
        %v2354 = vadd.f32 %v2311, %v2353
        %v2355 = vpop.f32.mrf.mxu0
        %v2356 = vadd.f32 %v2313, %v2355
        %2357 = vdwg.mxu0
        %2358 = vmatprep.subr.bf16.mxu0 %v1747
        %2359 = vmatpush1.bf16.msra.mxu0 %v1746
        %2360 = vmatprep.subr.bf16.mxu0 %v1743
        %2361 = vmatpush1.bf16.msra.mxu0 %v1742
        %2362 = vmatprep.subr.bf16.mxu0 %v1739
        %2363 = vmatpush1.bf16.msra.mxu0 %v1738
        %2364 = vmatprep.subr.bf16.mxu0 %v1735
        %2365 = vmatpush1.bf16.msra.mxu0 %v1734
        %2366 = vmatprep.subr.bf16.mxu0 %v1731
        %2367 = vmatpush1.bf16.msra.mxu0 %v1730
        %2368 = vmatprep.subr.bf16.mxu0 %v1727
        %2369 = vmatpush1.bf16.msra.mxu0 %v1726
        %2370 = vmatprep.subr.bf16.mxu0 %v1723
        %2371 = vmatpush1.bf16.msra.mxu0 %v1722
        %2372 = vmatprep.subr.bf16.mxu0 %v1719
        %2373 = vmatpush1.bf16.msra.mxu0 %v1718
        %2374 = vmatprep.subr.bf16.mxu0 %v1779
        %2375 = vmatpush2.bf16.msra.mxu0 %v1778
        %2376 = vmatprep.subr.bf16.mxu0 %v1775
        %2377 = vmatpush2.bf16.msra.mxu0 %v1774
        %2378 = vmatprep.subr.bf16.mxu0 %v1771
        %2379 = vmatpush2.bf16.msra.mxu0 %v1770
        %2380 = vmatprep.subr.bf16.mxu0 %v1767
        %2381 = vmatpush2.bf16.msra.mxu0 %v1766
        %2382 = vmatprep.subr.bf16.mxu0 %v1763
        %2383 = vmatpush2.bf16.msra.mxu0 %v1762
        %2384 = vmatprep.subr.bf16.mxu0 %v1759
        %2385 = vmatpush2.bf16.msra.mxu0 %v1758
        %2386 = vmatprep.subr.bf16.mxu0 %v1755
        %2387 = vmatpush2.bf16.msra.mxu0 %v1754
        %2388 = vmatprep.subr.bf16.mxu0 %v1751
        %2389 = vmatpush2.bf16.msra.mxu0 %v1750
        %2390 = vmatprep.mubr.bf16.mxu0 %v809
        %2391 = vmatmul.mubr.bf16.gmra.mxu0 %v808
        %v2392 = vpop.f32.mrf.mxu0
        %v2393 = vadd.f32 %v2350, %v2392
        %v2394 = vpop.f32.mrf.mxu0
        %v2395 = vadd.f32 %v2352, %v2394
        %v2396 = vpop.f32.mrf.mxu0
        %v2397 = vadd.f32 %v2354, %v2396
        %v2398 = vpop.f32.mrf.mxu0
        %v2399 = vadd.f32 %v2356, %v2398
        %2400 = vdwg.mxu0
        %2401 = vmatprep.subr.bf16.mxu0 %v1811
        %2402 = vmatpush1.bf16.msra.mxu0 %v1810
        %2403 = vmatprep.subr.bf16.mxu0 %v1807
        %2404 = vmatpush1.bf16.msra.mxu0 %v1806
        %2405 = vmatprep.subr.bf16.mxu0 %v1803
        %2406 = vmatpush1.bf16.msra.mxu0 %v1802
        %2407 = vmatprep.subr.bf16.mxu0 %v1799
        %2408 = vmatpush1.bf16.msra.mxu0 %v1798
        %2409 = vmatprep.subr.bf16.mxu0 %v1795
        %2410 = vmatpush1.bf16.msra.mxu0 %v1794
        %2411 = vmatprep.subr.bf16.mxu0 %v1791
        %2412 = vmatpush1.bf16.msra.mxu0 %v1790
        %2413 = vmatprep.subr.bf16.mxu0 %v1787
        %2414 = vmatpush1.bf16.msra.mxu0 %v1786
        %2415 = vmatprep.subr.bf16.mxu0 %v1783
        %2416 = vmatpush1.bf16.msra.mxu0 %v1782
        %2417 = vmatprep.subr.bf16.mxu0 %v1843
        %2418 = vmatpush2.bf16.msra.mxu0 %v1842
        %2419 = vmatprep.subr.bf16.mxu0 %v1839
        %2420 = vmatpush2.bf16.msra.mxu0 %v1838
        %2421 = vmatprep.subr.bf16.mxu0 %v1835
        %2422 = vmatpush2.bf16.msra.mxu0 %v1834
        %2423 = vmatprep.subr.bf16.mxu0 %v1831
        %2424 = vmatpush2.bf16.msra.mxu0 %v1830
        %2425 = vmatprep.subr.bf16.mxu0 %v1827
        %2426 = vmatpush2.bf16.msra.mxu0 %v1826
        %2427 = vmatprep.subr.bf16.mxu0 %v1823
        %2428 = vmatpush2.bf16.msra.mxu0 %v1822
        %2429 = vmatprep.subr.bf16.mxu0 %v1819
        %2430 = vmatpush2.bf16.msra.mxu0 %v1818
        %2431 = vmatprep.subr.bf16.mxu0 %v1815
        %2432 = vmatpush2.bf16.msra.mxu0 %v1814
        %2433 = vmatprep.mubr.bf16.mxu0 %v811
        %2434 = vmatmul.mubr.bf16.gmra.mxu0 %v810
        %v2435 = vpop.f32.mrf.mxu0
        %v2436 = vadd.f32 %v2393, %v2435
        %v2437 = vpop.f32.mrf.mxu0
        %v2438 = vadd.f32 %v2395, %v2437
        %v2439 = vpop.f32.mrf.mxu0
        %v2440 = vadd.f32 %v2397, %v2439
        %v2441 = vpop.f32.mrf.mxu0
        %v2442 = vadd.f32 %v2399, %v2441
        %2443 = vdwg.mxu0
        %v2444 = vmax.f32 %v2264, 0.0
        %v2445 = vmax.f32 %v2266, 0.0
        %v2446 = vmax.f32 %v2436, 0.0
        %v2447 = vmax.f32 %v2438, 0.0
        %v2448 = vmax.f32 %v2268, 0.0
        %v2449 = vmax.f32 %v2270, 0.0
        %v2450 = vmax.f32 %v2440, 0.0
        %v2451 = vmax.f32 %v2442, 0.0
        %v2452 = vpack.c.bf16 %v2448, %v2444
        %v2453 = vpack.c.bf16 %v2449, %v2445
        %v2454 = vpack.c.bf16 %v2450, %v2446
        %v2455 = vpack.c.bf16 %v2451, %v2447
        %v2456 = vld [vmem:[#allocation8] sm:$0xff]
        %v2457 = vld [vmem:[#allocation8 + $0x8] sm:$0xff]
        %v2458 = vld [vmem:[#allocation8 + $0x10] sm:$0xff]
        %v2459 = vld [vmem:[#allocation8 + $0x18] sm:$0xff]
        %v2460 = vld [vmem:[#allocation8 + $0x20] sm:$0xff]
        %v2461 = vld [vmem:[#allocation8 + $0x28] sm:$0xff]
        %v2462 = vld [vmem:[#allocation8 + $0x30] sm:$0xff]
        %v2463 = vld [vmem:[#allocation8 + $0x38] sm:$0xff]
        %v2464 = vld [vmem:[#allocation8 + $0x40] sm:$0xff]
        %v2465 = vld [vmem:[#allocation8 + $0x48] sm:$0xff]
        %v2466 = vld [vmem:[#allocation8 + $0x50] sm:$0xff]
        %v2467 = vld [vmem:[#allocation8 + $0x58] sm:$0xff]
        %v2468 = vld [vmem:[#allocation8 + $0x60] sm:$0xff]
        %v2469 = vld [vmem:[#allocation8 + $0x68] sm:$0xff]
        %v2470 = vld [vmem:[#allocation8 + $0x70] sm:$0xff]
        %v2471 = vld [vmem:[#allocation8 + $0x78] sm:$0xff]
        %v2472 = vld [vmem:[#allocation8 + $0x80] sm:$0xff]
        %v2473 = vld [vmem:[#allocation8 + $0x88] sm:$0xff]
        %v2474 = vld [vmem:[#allocation8 + $0x90] sm:$0xff]
        %v2475 = vld [vmem:[#allocation8 + $0x98] sm:$0xff]
        %v2476 = vld [vmem:[#allocation8 + $0xa0] sm:$0xff]
        %v2477 = vld [vmem:[#allocation8 + $0xa8] sm:$0xff]
        %v2478 = vld [vmem:[#allocation8 + $0xb0] sm:$0xff]
        %v2479 = vld [vmem:[#allocation8 + $0xb8] sm:$0xff]
        %v2480 = vld [vmem:[#allocation8 + $0xc0] sm:$0xff]
        %v2481 = vld [vmem:[#allocation8 + $0xc8] sm:$0xff]
        %v2482 = vld [vmem:[#allocation8 + $0xd0] sm:$0xff]
        %v2483 = vld [vmem:[#allocation8 + $0xd8] sm:$0xff]
        %v2484 = vld [vmem:[#allocation8 + $0xe0] sm:$0xff]
        %v2485 = vld [vmem:[#allocation8 + $0xe8] sm:$0xff]
        %v2486 = vld [vmem:[#allocation8 + $0xf0] sm:$0xff]
        %v2487 = vld [vmem:[#allocation8 + $0xf8] sm:$0xff]
        %v2488 = vld [vmem:[#allocation8 + $0x100] sm:$0xff]
        %v2489 = vld [vmem:[#allocation8 + $0x108] sm:$0xff]
        %v2490 = vld [vmem:[#allocation8 + $0x110] sm:$0xff]
        %v2491 = vld [vmem:[#allocation8 + $0x118] sm:$0xff]
        %v2492 = vld [vmem:[#allocation8 + $0x120] sm:$0xff]
        %v2493 = vld [vmem:[#allocation8 + $0x128] sm:$0xff]
        %v2494 = vld [vmem:[#allocation8 + $0x130] sm:$0xff]
        %v2495 = vld [vmem:[#allocation8 + $0x138] sm:$0xff]
        %v2496 = vld [vmem:[#allocation8 + $0x140] sm:$0xff]
        %v2497 = vld [vmem:[#allocation8 + $0x148] sm:$0xff]
        %v2498 = vld [vmem:[#allocation8 + $0x150] sm:$0xff]
        %v2499 = vld [vmem:[#allocation8 + $0x158] sm:$0xff]
        %v2500 = vld [vmem:[#allocation8 + $0x160] sm:$0xff]
        %v2501 = vld [vmem:[#allocation8 + $0x168] sm:$0xff]
        %v2502 = vld [vmem:[#allocation8 + $0x170] sm:$0xff]
        %v2503 = vld [vmem:[#allocation8 + $0x178] sm:$0xff]
        %v2504 = vld [vmem:[#allocation8 + $0x180] sm:$0xff]
        %v2505 = vld [vmem:[#allocation8 + $0x188] sm:$0xff]
        %v2506 = vld [vmem:[#allocation8 + $0x190] sm:$0xff]
        %v2507 = vld [vmem:[#allocation8 + $0x198] sm:$0xff]
        %v2508 = vld [vmem:[#allocation8 + $0x1a0] sm:$0xff]
        %v2509 = vld [vmem:[#allocation8 + $0x1a8] sm:$0xff]
        %v2510 = vld [vmem:[#allocation8 + $0x1b0] sm:$0xff]
        %v2511 = vld [vmem:[#allocation8 + $0x1b8] sm:$0xff]
        %v2512 = vld [vmem:[#allocation8 + $0x1c0] sm:$0xff]
        %v2513 = vld [vmem:[#allocation8 + $0x1c8] sm:$0xff]
        %v2514 = vld [vmem:[#allocation8 + $0x1d0] sm:$0xff]
        %v2515 = vld [vmem:[#allocation8 + $0x1d8] sm:$0xff]
        %v2516 = vld [vmem:[#allocation8 + $0x1e0] sm:$0xff]
        %v2517 = vld [vmem:[#allocation8 + $0x1e8] sm:$0xff]
        %v2518 = vld [vmem:[#allocation8 + $0x1f0] sm:$0xff]
        %v2519 = vld [vmem:[#allocation8 + $0x1f8] sm:$0xff]
        %v2520 = vld [vmem:[%s4] sm:$0x3]
        %v2522 = vlaneseq
        %v2523 = vshrl.u32 %v2522, 7
        %v2524 = vsub.s32 0, %v2523
        %v2525 = vrot.slane %v2520, %v2524
        %v2526 = vlaneseq
        %v2527 = vshrl.u32 %v2526, 7
        %v2528 = vsub.s32 1, %v2527
        %v2529 = vrot.slane %v2520, %v2528
        %v2596 = vunpack.c.l.b16 %v2456
        %v2597 = vunpack.c.h.b16 %v2456
        %v2598 = vunpack.c.l.b16 %v2457
        %v2599 = vunpack.c.h.b16 %v2457
        %v2600 = vunpack.c.l.b16 %v2458
        %v2601 = vunpack.c.h.b16 %v2458
        %v2602 = vunpack.c.l.b16 %v2459
        %v2603 = vunpack.c.h.b16 %v2459
        %v2604 = vunpack.c.l.b16 %v2460
        %v2605 = vunpack.c.h.b16 %v2460
        %v2606 = vunpack.c.l.b16 %v2461
        %v2607 = vunpack.c.h.b16 %v2461
        %v2608 = vunpack.c.l.b16 %v2462
        %v2609 = vunpack.c.h.b16 %v2462
        %v2610 = vunpack.c.l.b16 %v2463
        %v2611 = vunpack.c.h.b16 %v2463
        %v2612 = vunpack.c.l.b16 %v2464
        %v2613 = vunpack.c.h.b16 %v2464
        %v2614 = vunpack.c.l.b16 %v2465
        %v2615 = vunpack.c.h.b16 %v2465
        %v2616 = vunpack.c.l.b16 %v2466
        %v2617 = vunpack.c.h.b16 %v2466
        %v2618 = vunpack.c.l.b16 %v2467
        %v2619 = vunpack.c.h.b16 %v2467
        %v2620 = vunpack.c.l.b16 %v2468
        %v2621 = vunpack.c.h.b16 %v2468
        %v2622 = vunpack.c.l.b16 %v2469
        %v2623 = vunpack.c.h.b16 %v2469
        %v2624 = vunpack.c.l.b16 %v2470
        %v2625 = vunpack.c.h.b16 %v2470
        %v2626 = vunpack.c.l.b16 %v2471
        %v2627 = vunpack.c.h.b16 %v2471
        %v2628 = vunpack.c.l.b16 %v2472
        %v2629 = vunpack.c.h.b16 %v2472
        %v2630 = vunpack.c.l.b16 %v2473
        %v2631 = vunpack.c.h.b16 %v2473
        %v2632 = vunpack.c.l.b16 %v2474
        %v2633 = vunpack.c.h.b16 %v2474
        %v2634 = vunpack.c.l.b16 %v2475
        %v2635 = vunpack.c.h.b16 %v2475
        %v2636 = vunpack.c.l.b16 %v2476
        %v2637 = vunpack.c.h.b16 %v2476
        %v2638 = vunpack.c.l.b16 %v2477
        %v2639 = vunpack.c.h.b16 %v2477
        %v2640 = vunpack.c.l.b16 %v2478
        %v2641 = vunpack.c.h.b16 %v2478
        %v2642 = vunpack.c.l.b16 %v2479
        %v2643 = vunpack.c.h.b16 %v2479
        %v2644 = vunpack.c.l.b16 %v2480
        %v2645 = vunpack.c.h.b16 %v2480
        %v2646 = vunpack.c.l.b16 %v2481
        %v2647 = vunpack.c.h.b16 %v2481
        %v2648 = vunpack.c.l.b16 %v2482
        %v2649 = vunpack.c.h.b16 %v2482
        %v2650 = vunpack.c.l.b16 %v2483
        %v2651 = vunpack.c.h.b16 %v2483
        %v2652 = vunpack.c.l.b16 %v2484
        %v2653 = vunpack.c.h.b16 %v2484
        %v2654 = vunpack.c.l.b16 %v2485
        %v2655 = vunpack.c.h.b16 %v2485
        %v2656 = vunpack.c.l.b16 %v2486
        %v2657 = vunpack.c.h.b16 %v2486
        %v2658 = vunpack.c.l.b16 %v2487
        %v2659 = vunpack.c.h.b16 %v2487
        %v2660 = vunpack.c.l.b16 %v2488
        %v2661 = vunpack.c.h.b16 %v2488
        %v2662 = vunpack.c.l.b16 %v2489
        %v2663 = vunpack.c.h.b16 %v2489
        %v2664 = vunpack.c.l.b16 %v2490
        %v2665 = vunpack.c.h.b16 %v2490
        %v2666 = vunpack.c.l.b16 %v2491
        %v2667 = vunpack.c.h.b16 %v2491
        %v2668 = vunpack.c.l.b16 %v2492
        %v2669 = vunpack.c.h.b16 %v2492
        %v2670 = vunpack.c.l.b16 %v2493
        %v2671 = vunpack.c.h.b16 %v2493
        %v2672 = vunpack.c.l.b16 %v2494
        %v2673 = vunpack.c.h.b16 %v2494
        %v2674 = vunpack.c.l.b16 %v2495
        %v2675 = vunpack.c.h.b16 %v2495
        %v2676 = vunpack.c.l.b16 %v2496
        %v2677 = vunpack.c.h.b16 %v2496
        %v2678 = vunpack.c.l.b16 %v2497
        %v2679 = vunpack.c.h.b16 %v2497
        %v2680 = vunpack.c.l.b16 %v2498
        %v2681 = vunpack.c.h.b16 %v2498
        %v2682 = vunpack.c.l.b16 %v2499
        %v2683 = vunpack.c.h.b16 %v2499
        %v2684 = vunpack.c.l.b16 %v2500
        %v2685 = vunpack.c.h.b16 %v2500
        %v2686 = vunpack.c.l.b16 %v2501
        %v2687 = vunpack.c.h.b16 %v2501
        %v2688 = vunpack.c.l.b16 %v2502
        %v2689 = vunpack.c.h.b16 %v2502
        %v2690 = vunpack.c.l.b16 %v2503
        %v2691 = vunpack.c.h.b16 %v2503
        %v2692 = vunpack.c.l.b16 %v2504
        %v2693 = vunpack.c.h.b16 %v2504
        %v2694 = vunpack.c.l.b16 %v2505
        %v2695 = vunpack.c.h.b16 %v2505
        %v2696 = vunpack.c.l.b16 %v2506
        %v2697 = vunpack.c.h.b16 %v2506
        %v2698 = vunpack.c.l.b16 %v2507
        %v2699 = vunpack.c.h.b16 %v2507
        %v2700 = vunpack.c.l.b16 %v2508
        %v2701 = vunpack.c.h.b16 %v2508
        %v2702 = vunpack.c.l.b16 %v2509
        %v2703 = vunpack.c.h.b16 %v2509
        %v2704 = vunpack.c.l.b16 %v2510
        %v2705 = vunpack.c.h.b16 %v2510
        %v2706 = vunpack.c.l.b16 %v2511
        %v2707 = vunpack.c.h.b16 %v2511
        %v2708 = vunpack.c.l.b16 %v2512
        %v2709 = vunpack.c.h.b16 %v2512
        %v2710 = vunpack.c.l.b16 %v2513
        %v2711 = vunpack.c.h.b16 %v2513
        %v2712 = vunpack.c.l.b16 %v2514
        %v2713 = vunpack.c.h.b16 %v2514
        %v2714 = vunpack.c.l.b16 %v2515
        %v2715 = vunpack.c.h.b16 %v2515
        %v2716 = vunpack.c.l.b16 %v2516
        %v2717 = vunpack.c.h.b16 %v2516
        %v2718 = vunpack.c.l.b16 %v2517
        %v2719 = vunpack.c.h.b16 %v2517
        %v2720 = vunpack.c.l.b16 %v2518
        %v2721 = vunpack.c.h.b16 %v2518
        %v2722 = vunpack.c.l.b16 %v2519
        %v2723 = vunpack.c.h.b16 %v2519
        %v2724 = vpack.c.b16 %v2598, %v2596
        %v2725 = vpack.c.b16 %v2599, %v2597
        %v2726 = vpack.c.b16 %v2602, %v2600
        %v2727 = vpack.c.b16 %v2603, %v2601
        %v2728 = vpack.c.b16 %v2606, %v2604
        %v2729 = vpack.c.b16 %v2607, %v2605
        %v2730 = vpack.c.b16 %v2610, %v2608
        %v2731 = vpack.c.b16 %v2611, %v2609
        %v2732 = vpack.c.b16 %v2614, %v2612
        %v2733 = vpack.c.b16 %v2615, %v2613
        %v2734 = vpack.c.b16 %v2618, %v2616
        %v2735 = vpack.c.b16 %v2619, %v2617
        %v2736 = vpack.c.b16 %v2622, %v2620
        %v2737 = vpack.c.b16 %v2623, %v2621
        %v2738 = vpack.c.b16 %v2626, %v2624
        %v2739 = vpack.c.b16 %v2627, %v2625
        %v2740 = vpack.c.b16 %v2630, %v2628
        %v2741 = vpack.c.b16 %v2631, %v2629
        %v2742 = vpack.c.b16 %v2634, %v2632
        %v2743 = vpack.c.b16 %v2635, %v2633
        %v2744 = vpack.c.b16 %v2638, %v2636
        %v2745 = vpack.c.b16 %v2639, %v2637
        %v2746 = vpack.c.b16 %v2642, %v2640
        %v2747 = vpack.c.b16 %v2643, %v2641
        %v2748 = vpack.c.b16 %v2646, %v2644
        %v2749 = vpack.c.b16 %v2647, %v2645
        %v2750 = vpack.c.b16 %v2650, %v2648
        %v2751 = vpack.c.b16 %v2651, %v2649
        %v2752 = vpack.c.b16 %v2654, %v2652
        %v2753 = vpack.c.b16 %v2655, %v2653
        %v2754 = vpack.c.b16 %v2658, %v2656
        %v2755 = vpack.c.b16 %v2659, %v2657
        %v2756 = vpack.c.b16 %v2662, %v2660
        %v2757 = vpack.c.b16 %v2663, %v2661
        %v2758 = vpack.c.b16 %v2666, %v2664
        %v2759 = vpack.c.b16 %v2667, %v2665
        %v2760 = vpack.c.b16 %v2670, %v2668
        %v2761 = vpack.c.b16 %v2671, %v2669
        %v2762 = vpack.c.b16 %v2674, %v2672
        %v2763 = vpack.c.b16 %v2675, %v2673
        %v2764 = vpack.c.b16 %v2678, %v2676
        %v2765 = vpack.c.b16 %v2679, %v2677
        %v2766 = vpack.c.b16 %v2682, %v2680
        %v2767 = vpack.c.b16 %v2683, %v2681
        %v2768 = vpack.c.b16 %v2686, %v2684
        %v2769 = vpack.c.b16 %v2687, %v2685
        %v2770 = vpack.c.b16 %v2690, %v2688
        %v2771 = vpack.c.b16 %v2691, %v2689
        %v2772 = vpack.c.b16 %v2694, %v2692
        %v2773 = vpack.c.b16 %v2695, %v2693
        %v2774 = vpack.c.b16 %v2698, %v2696
        %v2775 = vpack.c.b16 %v2699, %v2697
        %v2776 = vpack.c.b16 %v2702, %v2700
        %v2777 = vpack.c.b16 %v2703, %v2701
        %v2778 = vpack.c.b16 %v2706, %v2704
        %v2779 = vpack.c.b16 %v2707, %v2705
        %v2780 = vpack.c.b16 %v2710, %v2708
        %v2781 = vpack.c.b16 %v2711, %v2709
        %v2782 = vpack.c.b16 %v2714, %v2712
        %v2783 = vpack.c.b16 %v2715, %v2713
        %v2784 = vpack.c.b16 %v2718, %v2716
        %v2785 = vpack.c.b16 %v2719, %v2717
        %v2786 = vpack.c.b16 %v2722, %v2720
        %v2787 = vpack.c.b16 %v2723, %v2721
        %2852 = vmatprep.subr.bf16.mxu0 %v2739
        %2853 = vmatpush1.bf16.msra.mxu0 %v2738
        %2854 = vmatprep.subr.bf16.mxu0 %v2737
        %2855 = vmatpush1.bf16.msra.mxu0 %v2736
        %2856 = vmatprep.subr.bf16.mxu0 %v2735
        %2857 = vmatpush1.bf16.msra.mxu0 %v2734
        %2858 = vmatprep.subr.bf16.mxu0 %v2733
        %2859 = vmatpush1.bf16.msra.mxu0 %v2732
        %2860 = vmatprep.subr.bf16.mxu0 %v2731
        %2861 = vmatpush1.bf16.msra.mxu0 %v2730
        %2862 = vmatprep.subr.bf16.mxu0 %v2729
        %2863 = vmatpush1.bf16.msra.mxu0 %v2728
        %2864 = vmatprep.subr.bf16.mxu0 %v2727
        %2865 = vmatpush1.bf16.msra.mxu0 %v2726
        %2866 = vmatprep.subr.bf16.mxu0 %v2725
        %2867 = vmatpush1.bf16.msra.mxu0 %v2724
        %2868 = vmatprep.subr.bf16.mxu0 %v2755
        %2869 = vmatpush2.bf16.msra.mxu0 %v2754
        %2870 = vmatprep.subr.bf16.mxu0 %v2753
        %2871 = vmatpush2.bf16.msra.mxu0 %v2752
        %2872 = vmatprep.subr.bf16.mxu0 %v2751
        %2873 = vmatpush2.bf16.msra.mxu0 %v2750
        %2874 = vmatprep.subr.bf16.mxu0 %v2749
        %2875 = vmatpush2.bf16.msra.mxu0 %v2748
        %2876 = vmatprep.subr.bf16.mxu0 %v2747
        %2877 = vmatpush2.bf16.msra.mxu0 %v2746
        %2878 = vmatprep.subr.bf16.mxu0 %v2745
        %2879 = vmatpush2.bf16.msra.mxu0 %v2744
        %2880 = vmatprep.subr.bf16.mxu0 %v2743
        %2881 = vmatpush2.bf16.msra.mxu0 %v2742
        %2882 = vmatprep.subr.bf16.mxu0 %v2741
        %2883 = vmatpush2.bf16.msra.mxu0 %v2740
        %2884 = vmatprep.mubr.bf16.mxu0 %v2453
        %2885 = vmatmul.mubr.bf16.gmra.mxu0 %v2452
        %v2886 = vpop.f32.mrf.mxu0
        %v2887 = vadd.f32 %v2525, %v2886
        %v2888 = vpop.f32.mrf.mxu0
        %v2889 = vadd.f32 %v2529, %v2888
        %v2890 = vpop.f32.mrf.mxu0
        %v2891 = vadd.f32 %v2525, %v2890
        %v2892 = vpop.f32.mrf.mxu0
        %v2893 = vadd.f32 %v2529, %v2892
        %2894 = vdwg.mxu0
        %2895 = vmatprep.subr.bf16.mxu0 %v2771
        %2896 = vmatpush1.bf16.msra.mxu0 %v2770
        %2897 = vmatprep.subr.bf16.mxu0 %v2769
        %2898 = vmatpush1.bf16.msra.mxu0 %v2768
        %2899 = vmatprep.subr.bf16.mxu0 %v2767
        %2900 = vmatpush1.bf16.msra.mxu0 %v2766
        %2901 = vmatprep.subr.bf16.mxu0 %v2765
        %2902 = vmatpush1.bf16.msra.mxu0 %v2764
        %2903 = vmatprep.subr.bf16.mxu0 %v2763
        %2904 = vmatpush1.bf16.msra.mxu0 %v2762
        %2905 = vmatprep.subr.bf16.mxu0 %v2761
        %2906 = vmatpush1.bf16.msra.mxu0 %v2760
        %2907 = vmatprep.subr.bf16.mxu0 %v2759
        %2908 = vmatpush1.bf16.msra.mxu0 %v2758
        %2909 = vmatprep.subr.bf16.mxu0 %v2757
        %2910 = vmatpush1.bf16.msra.mxu0 %v2756
        %2911 = vmatprep.subr.bf16.mxu0 %v2787
        %2912 = vmatpush2.bf16.msra.mxu0 %v2786
        %2913 = vmatprep.subr.bf16.mxu0 %v2785
        %2914 = vmatpush2.bf16.msra.mxu0 %v2784
        %2915 = vmatprep.subr.bf16.mxu0 %v2783
        %2916 = vmatpush2.bf16.msra.mxu0 %v2782
        %2917 = vmatprep.subr.bf16.mxu0 %v2781
        %2918 = vmatpush2.bf16.msra.mxu0 %v2780
        %2919 = vmatprep.subr.bf16.mxu0 %v2779
        %2920 = vmatpush2.bf16.msra.mxu0 %v2778
        %2921 = vmatprep.subr.bf16.mxu0 %v2777
        %2922 = vmatpush2.bf16.msra.mxu0 %v2776
        %2923 = vmatprep.subr.bf16.mxu0 %v2775
        %2924 = vmatpush2.bf16.msra.mxu0 %v2774
        %2925 = vmatprep.subr.bf16.mxu0 %v2773
        %2926 = vmatpush2.bf16.msra.mxu0 %v2772
        %2927 = vmatprep.mubr.bf16.mxu0 %v2455
        %2928 = vmatmul.mubr.bf16.gmra.mxu0 %v2454
        %v2929 = vpop.f32.mrf.mxu0
        %v2930 = vadd.f32 %v2887, %v2929
        %v2931 = vpop.f32.mrf.mxu0
        %v2932 = vadd.f32 %v2889, %v2931
        %v2933 = vpop.f32.mrf.mxu0
        %v2934 = vadd.f32 %v2891, %v2933
        %v2935 = vpop.f32.mrf.mxu0
        %v2936 = vadd.f32 %v2893, %v2935
        %2937 = vdwg.mxu0
        %v2938 = vmax.f32 %v2930, 0.0
        %v2939 = vmax.f32 %v2932, 0.0
        %v2940 = vmax.f32 %v2934, 0.0
        %v2941 = vmax.f32 %v2936, 0.0
        %v2942 = vpack.c.bf16 %v2940, %v2938
        %v2943 = vpack.c.bf16 %v2941, %v2939
        %v2944 = vld [vmem:[#allocation10] sm:$0xf]
        %v2945 = vld [vmem:[#allocation10 + $0x4] sm:$0xf]
        %v2946 = vld [vmem:[#allocation10 + $0x8] sm:$0xf]
        %v2947 = vld [vmem:[#allocation10 + $0xc] sm:$0xf]
        %v2948 = vld [vmem:[#allocation10 + $0x10] sm:$0xf]
        %v2949 = vld [vmem:[#allocation10 + $0x14] sm:$0xf]
        %v2950 = vld [vmem:[#allocation10 + $0x18] sm:$0xf]
        %v2951 = vld [vmem:[#allocation10 + $0x1c] sm:$0xf]
        %v2952 = vld [vmem:[#allocation10 + $0x20] sm:$0xf]
        %v2953 = vld [vmem:[#allocation10 + $0x24] sm:$0xf]
        %v2954 = vld [vmem:[#allocation10 + $0x28] sm:$0xf]
        %v2955 = vld [vmem:[#allocation10 + $0x2c] sm:$0xf]
        %v2956 = vld [vmem:[#allocation10 + $0x30] sm:$0xf]
        %v2957 = vld [vmem:[#allocation10 + $0x34] sm:$0xf]
        %v2958 = vld [vmem:[#allocation10 + $0x38] sm:$0xf]
        %v2959 = vld [vmem:[#allocation10 + $0x3c] sm:$0xf]
        %v2960 = vld [vmem:[#allocation10 + $0x40] sm:$0xf]
        %v2961 = vld [vmem:[#allocation10 + $0x44] sm:$0xf]
        %v2962 = vld [vmem:[#allocation10 + $0x48] sm:$0xf]
        %v2963 = vld [vmem:[#allocation10 + $0x4c] sm:$0xf]
        %v2964 = vld [vmem:[#allocation10 + $0x50] sm:$0xf]
        %v2965 = vld [vmem:[#allocation10 + $0x54] sm:$0xf]
        %v2966 = vld [vmem:[#allocation10 + $0x58] sm:$0xf]
        %v2967 = vld [vmem:[#allocation10 + $0x5c] sm:$0xf]
        %v2968 = vld [vmem:[#allocation10 + $0x60] sm:$0xf]
        %v2969 = vld [vmem:[#allocation10 + $0x64] sm:$0xf]
        %v2970 = vld [vmem:[#allocation10 + $0x68] sm:$0xf]
        %v2971 = vld [vmem:[#allocation10 + $0x6c] sm:$0xf]
        %v2972 = vld [vmem:[#allocation10 + $0x70] sm:$0xf]
        %v2973 = vld [vmem:[#allocation10 + $0x74] sm:$0xf]
        %v2974 = vld [vmem:[#allocation10 + $0x78] sm:$0xf]
        %v2975 = vld [vmem:[#allocation10 + $0x7c] sm:$0xf]
        %v2976 = vld [vmem:[%s6] sm:$0x1]
        %v2978 = vlaneseq
        %v2979 = vshrl.u32 %v2978, 7
        %v2980 = vsub.s32 0, %v2979
        %v2981 = vrot.slane %v2976, %v2980
        %v3015 = vunpack.c.l.b16 %v2944
        %v3016 = vunpack.c.l.b16 %v2945
        %v3017 = vunpack.c.l.b16 %v2946
        %v3018 = vunpack.c.l.b16 %v2947
        %v3019 = vunpack.c.l.b16 %v2948
        %v3020 = vunpack.c.l.b16 %v2949
        %v3021 = vunpack.c.l.b16 %v2950
        %v3022 = vunpack.c.l.b16 %v2951
        %v3023 = vunpack.c.l.b16 %v2952
        %v3024 = vunpack.c.l.b16 %v2953
        %v3025 = vunpack.c.l.b16 %v2954
        %v3026 = vunpack.c.l.b16 %v2955
        %v3027 = vunpack.c.l.b16 %v2956
        %v3028 = vunpack.c.l.b16 %v2957
        %v3029 = vunpack.c.l.b16 %v2958
        %v3030 = vunpack.c.l.b16 %v2959
        %v3031 = vunpack.c.l.b16 %v2960
        %v3032 = vunpack.c.l.b16 %v2961
        %v3033 = vunpack.c.l.b16 %v2962
        %v3034 = vunpack.c.l.b16 %v2963
        %v3035 = vunpack.c.l.b16 %v2964
        %v3036 = vunpack.c.l.b16 %v2965
        %v3037 = vunpack.c.l.b16 %v2966
        %v3038 = vunpack.c.l.b16 %v2967
        %v3039 = vunpack.c.l.b16 %v2968
        %v3040 = vunpack.c.l.b16 %v2969
        %v3041 = vunpack.c.l.b16 %v2970
        %v3042 = vunpack.c.l.b16 %v2971
        %v3043 = vunpack.c.l.b16 %v2972
        %v3044 = vunpack.c.l.b16 %v2973
        %v3045 = vunpack.c.l.b16 %v2974
        %v3046 = vunpack.c.l.b16 %v2975
        %v3047 = vpack.c.b16 %v3016, %v3015
        %v3048 = vpack.c.b16 %v3018, %v3017
        %v3049 = vpack.c.b16 %v3020, %v3019
        %v3050 = vpack.c.b16 %v3022, %v3021
        %v3051 = vpack.c.b16 %v3024, %v3023
        %v3052 = vpack.c.b16 %v3026, %v3025
        %v3053 = vpack.c.b16 %v3028, %v3027
        %v3054 = vpack.c.b16 %v3030, %v3029
        %v3055 = vpack.c.b16 %v3032, %v3031
        %v3056 = vpack.c.b16 %v3034, %v3033
        %v3057 = vpack.c.b16 %v3036, %v3035
        %v3058 = vpack.c.b16 %v3038, %v3037
        %v3059 = vpack.c.b16 %v3040, %v3039
        %v3060 = vpack.c.b16 %v3042, %v3041
        %v3061 = vpack.c.b16 %v3044, %v3043
        %v3062 = vpack.c.b16 %v3046, %v3045
        %3079 = vmatprep.subr.bf16.mxu0 0
        %3080 = vmatpush1.bf16.msra.mxu0 %v3054
        %3081 = vmatprep.subr.bf16.mxu0 0
        %3082 = vmatpush1.bf16.msra.mxu0 %v3053
        %3083 = vmatprep.subr.bf16.mxu0 0
        %3084 = vmatpush1.bf16.msra.mxu0 %v3052
        %3085 = vmatprep.subr.bf16.mxu0 0
        %3086 = vmatpush1.bf16.msra.mxu0 %v3051
        %3087 = vmatprep.subr.bf16.mxu0 0
        %3088 = vmatpush1.bf16.msra.mxu0 %v3050
        %3089 = vmatprep.subr.bf16.mxu0 0
        %3090 = vmatpush1.bf16.msra.mxu0 %v3049
        %3091 = vmatprep.subr.bf16.mxu0 0
        %3092 = vmatpush1.bf16.msra.mxu0 %v3048
        %3093 = vmatprep.subr.bf16.mxu0 0
        %3094 = vmatpush1.bf16.msra.mxu0 %v3047
        %3095 = vmatprep.subr.bf16.mxu0 0
        %3096 = vmatpush2.bf16.msra.mxu0 %v3062
        %3097 = vmatprep.subr.bf16.mxu0 0
        %3098 = vmatpush2.bf16.msra.mxu0 %v3061
        %3099 = vmatprep.subr.bf16.mxu0 0
        %3100 = vmatpush2.bf16.msra.mxu0 %v3060
        %3101 = vmatprep.subr.bf16.mxu0 0
        %3102 = vmatpush2.bf16.msra.mxu0 %v3059
        %3103 = vmatprep.subr.bf16.mxu0 0
        %3104 = vmatpush2.bf16.msra.mxu0 %v3058
        %3105 = vmatprep.subr.bf16.mxu0 0
        %3106 = vmatpush2.bf16.msra.mxu0 %v3057
        %3107 = vmatprep.subr.bf16.mxu0 0
        %3108 = vmatpush2.bf16.msra.mxu0 %v3056
        %3109 = vmatprep.subr.bf16.mxu0 0
        %3110 = vmatpush2.bf16.msra.mxu0 %v3055
        %3111 = vmatprep.mubr.bf16.mxu0 %v2943
        %3112 = vmatmul.mubr.bf16.gmra.mxu0 %v2942
        %v3113 = vpop.f32.mrf.mxu0
        %v3114 = vadd.f32 %v2981, %v3113
        %v3115 = vpop.f32.mrf.mxu0
        %v3116 = vpop.f32.mrf.mxu0
        %v3117 = vadd.f32 %v2981, %v3116
        %v3118 = vpop.f32.mrf.mxu0
        %3119 = vdwg.mxu0
        %v3120 = vmax.f32 %v3114, 0.0
        %v3121 = vmax.f32 %v3117, 0.0
        %v3122 = vpack.c.bf16 %v3121, %v3120
        %v3123 = vld [vmem:[#allocation11] sm:$0xf]
        %v3124 = vld [vmem:[#allocation11 + $0x4] sm:$0xf]
        %v3125 = vld [vmem:[#allocation11 + $0x8] sm:$0xf]
        %v3126 = vld [vmem:[#allocation11 + $0xc] sm:$0xf]
        %v3127 = vld [vmem:[#allocation11 + $0x10] sm:$0xf]
        %v3128 = vld [vmem:[#allocation11 + $0x14] sm:$0xf]
        %v3129 = vld [vmem:[#allocation11 + $0x18] sm:$0xf]
        %v3130 = vld [vmem:[#allocation11 + $0x1c] sm:$0xf]
        %v3131 = vld [vmem:[#allocation11 + $0x20] sm:$0xf]
        %v3132 = vld [vmem:[#allocation11 + $0x24] sm:$0xf]
        %v3133 = vld [vmem:[#allocation11 + $0x28] sm:$0xf]
        %v3134 = vld [vmem:[#allocation11 + $0x2c] sm:$0xf]
        %v3135 = vld [vmem:[#allocation11 + $0x30] sm:$0xf]
        %v3136 = vld [vmem:[#allocation11 + $0x34] sm:$0xf]
        %v3137 = vld [vmem:[#allocation11 + $0x38] sm:$0xf]
        %v3138 = vld [vmem:[#allocation11 + $0x3c] sm:$0xf]
        %v3139 = vld [vmem:[%s8] sm:$0x1]
        %v3141 = vlaneseq
        %v3142 = vshrl.u32 %v3141, 7
        %v3143 = vsub.s32 0, %v3142
        %v3144 = vrot.slane %v3139, %v3143
        %v3162 = vunpack.c.l.b16 %v3123
        %v3163 = vunpack.c.l.b16 %v3124
        %v3164 = vunpack.c.l.b16 %v3125
        %v3165 = vunpack.c.l.b16 %v3126
        %v3166 = vunpack.c.l.b16 %v3127
        %v3167 = vunpack.c.l.b16 %v3128
        %v3168 = vunpack.c.l.b16 %v3129
        %v3169 = vunpack.c.l.b16 %v3130
        %v3170 = vunpack.c.l.b16 %v3131
        %v3171 = vunpack.c.l.b16 %v3132
        %v3172 = vunpack.c.l.b16 %v3133
        %v3173 = vunpack.c.l.b16 %v3134
        %v3174 = vunpack.c.l.b16 %v3135
        %v3175 = vunpack.c.l.b16 %v3136
        %v3176 = vunpack.c.l.b16 %v3137
        %v3177 = vunpack.c.l.b16 %v3138
        %v3178 = vpack.c.b16 %v3163, %v3162
        %v3179 = vpack.c.b16 %v3165, %v3164
        %v3180 = vpack.c.b16 %v3167, %v3166
        %v3181 = vpack.c.b16 %v3169, %v3168
        %v3182 = vpack.c.b16 %v3171, %v3170
        %v3183 = vpack.c.b16 %v3173, %v3172
        %v3184 = vpack.c.b16 %v3175, %v3174
        %v3185 = vpack.c.b16 %v3177, %v3176
        %3194 = vmatprep.subr.bf16.mxu0 0
        %3195 = vmatpush1.bf16.msra.mxu0 %v3185
        %3196 = vmatprep.subr.bf16.mxu0 0
        %3197 = vmatpush1.bf16.msra.mxu0 %v3184
        %3198 = vmatprep.subr.bf16.mxu0 0
        %3199 = vmatpush1.bf16.msra.mxu0 %v3183
        %3200 = vmatprep.subr.bf16.mxu0 0
        %3201 = vmatpush1.bf16.msra.mxu0 %v3182
        %3202 = vmatprep.subr.bf16.mxu0 0
        %3203 = vmatpush1.bf16.msra.mxu0 %v3181
        %3204 = vmatprep.subr.bf16.mxu0 0
        %3205 = vmatpush1.bf16.msra.mxu0 %v3180
        %3206 = vmatprep.subr.bf16.mxu0 0
        %3207 = vmatpush1.bf16.msra.mxu0 %v3179
        %3208 = vmatprep.subr.bf16.mxu0 0
        %3209 = vmatpush1.bf16.msra.mxu0 %v3178
        %3210 = vmatprep.subr.bf16.mxu0 0
        %3211 = vmatpush2.bf16.msra.mxu0 0
        %3212 = vmatprep.subr.bf16.mxu0 0
        %3213 = vmatpush2.bf16.msra.mxu0 0
        %3214 = vmatprep.subr.bf16.mxu0 0
        %3215 = vmatpush2.bf16.msra.mxu0 0
        %3216 = vmatprep.subr.bf16.mxu0 0
        %3217 = vmatpush2.bf16.msra.mxu0 0
        %3218 = vmatprep.subr.bf16.mxu0 0
        %3219 = vmatpush2.bf16.msra.mxu0 0
        %3220 = vmatprep.subr.bf16.mxu0 0
        %3221 = vmatpush2.bf16.msra.mxu0 0
        %3222 = vmatprep.subr.bf16.mxu0 0
        %3223 = vmatpush2.bf16.msra.mxu0 0
        %3224 = vmatprep.subr.bf16.mxu0 0
        %3225 = vmatpush2.bf16.msra.mxu0 0
        %3226 = vmatprep.mubr.bf16.mxu0 0
        %3227 = vmatmul.mubr.bf16.gmra.mxu0 %v3122
        %v3228 = vpop.f32.mrf.mxu0
        %v3229 = vadd.f32 %v3144, %v3228
        %v3230 = vpop.f32.mrf.mxu0
        %v3231 = vpop.f32.mrf.mxu0
        %v3232 = vadd.f32 %v3144, %v3231
        %v3233 = vpop.f32.mrf.mxu0
        %3234 = vdwg.mxu0
        %v3235 = vmax.f32 %v3229, 0.0
        %v3236 = vmax.f32 %v3232, 0.0
        %v3237 = vpack.c.bf16 %v3236, %v3235
        %v3238 = vld [vmem:[#allocation13] sm:$0xf]
        %v3239 = vld [vmem:[#allocation13 + $0x4] sm:$0xf]
        %v3240 = vld [vmem:[#allocation13 + $0x8] sm:$0xf]
        %v3241 = vld [vmem:[#allocation13 + $0xc] sm:$0xf]
        %v3242 = vld [vmem:[#allocation13 + $0x10] sm:$0xf]
        %v3243 = vld [vmem:[#allocation13 + $0x14] sm:$0xf]
        %v3244 = vld [vmem:[#allocation13 + $0x18] sm:$0xf]
        %v3245 = vld [vmem:[#allocation13 + $0x1c] sm:$0xf]
        %v3246 = vld [vmem:[#allocation13 + $0x20] sm:$0xf]
        %v3247 = vld [vmem:[#allocation13 + $0x24] sm:$0xf]
        %v3248 = vld [vmem:[#allocation13 + $0x28] sm:$0xf]
        %v3249 = vld [vmem:[#allocation13 + $0x2c] sm:$0xf]
        %v3250 = vld [vmem:[#allocation13 + $0x30] sm:$0xf]
        %v3251 = vld [vmem:[#allocation13 + $0x34] sm:$0xf]
        %v3252 = vld [vmem:[#allocation13 + $0x38] sm:$0xf]
        %v3253 = vld [vmem:[#allocation13 + $0x3c] sm:$0xf]
        %v3254 = vld [vmem:[%s10] sm:$0x1]
        %v3256 = vlaneseq
        %v3257 = vshrl.u32 %v3256, 7
        %v3258 = vsub.s32 0, %v3257
        %v3259 = vrot.slane %v3254, %v3258
        %v3277 = vunpack.c.l.b16 %v3238
        %v3278 = vunpack.c.l.b16 %v3239
        %v3279 = vunpack.c.l.b16 %v3240
        %v3280 = vunpack.c.l.b16 %v3241
        %v3281 = vunpack.c.l.b16 %v3242
        %v3282 = vunpack.c.l.b16 %v3243
        %v3283 = vunpack.c.l.b16 %v3244
        %v3284 = vunpack.c.l.b16 %v3245
        %v3285 = vunpack.c.l.b16 %v3246
        %v3286 = vunpack.c.l.b16 %v3247
        %v3287 = vunpack.c.l.b16 %v3248
        %v3288 = vunpack.c.l.b16 %v3249
        %v3289 = vunpack.c.l.b16 %v3250
        %v3290 = vunpack.c.l.b16 %v3251
        %v3291 = vunpack.c.l.b16 %v3252
        %v3292 = vunpack.c.l.b16 %v3253
        %v3293 = vpack.c.b16 %v3278, %v3277
        %v3294 = vpack.c.b16 %v3280, %v3279
        %v3295 = vpack.c.b16 %v3282, %v3281
        %v3296 = vpack.c.b16 %v3284, %v3283
        %v3297 = vpack.c.b16 %v3286, %v3285
        %v3298 = vpack.c.b16 %v3288, %v3287
        %v3299 = vpack.c.b16 %v3290, %v3289
        %v3300 = vpack.c.b16 %v3292, %v3291
        %3309 = vmatprep.subr.bf16.mxu0 0
        %3310 = vmatpush1.bf16.msra.mxu0 %v3300
        %3311 = vmatprep.subr.bf16.mxu0 0
        %3312 = vmatpush1.bf16.msra.mxu0 %v3299
        %3313 = vmatprep.subr.bf16.mxu0 0
        %3314 = vmatpush1.bf16.msra.mxu0 %v3298
        %3315 = vmatprep.subr.bf16.mxu0 0
        %3316 = vmatpush1.bf16.msra.mxu0 %v3297
        %3317 = vmatprep.subr.bf16.mxu0 0
        %3318 = vmatpush1.bf16.msra.mxu0 %v3296
        %3319 = vmatprep.subr.bf16.mxu0 0
        %3320 = vmatpush1.bf16.msra.mxu0 %v3295
        %3321 = vmatprep.subr.bf16.mxu0 0
        %3322 = vmatpush1.bf16.msra.mxu0 %v3294
        %3323 = vmatprep.subr.bf16.mxu0 0
        %3324 = vmatpush1.bf16.msra.mxu0 %v3293
        %3325 = vmatprep.subr.bf16.mxu0 0
        %3326 = vmatpush2.bf16.msra.mxu0 0
        %3327 = vmatprep.subr.bf16.mxu0 0
        %3328 = vmatpush2.bf16.msra.mxu0 0
        %3329 = vmatprep.subr.bf16.mxu0 0
        %3330 = vmatpush2.bf16.msra.mxu0 0
        %3331 = vmatprep.subr.bf16.mxu0 0
        %3332 = vmatpush2.bf16.msra.mxu0 0
        %3333 = vmatprep.subr.bf16.mxu0 0
        %3334 = vmatpush2.bf16.msra.mxu0 0
        %3335 = vmatprep.subr.bf16.mxu0 0
        %3336 = vmatpush2.bf16.msra.mxu0 0
        %3337 = vmatprep.subr.bf16.mxu0 0
        %3338 = vmatpush2.bf16.msra.mxu0 0
        %3339 = vmatprep.subr.bf16.mxu0 0
        %3340 = vmatpush2.bf16.msra.mxu0 0
        %3341 = vmatprep.mubr.bf16.mxu0 0
        %3342 = vmatmul.mubr.bf16.gmra.mxu0 %v3237
        %v3343 = vpop.f32.mrf.mxu0
        %v3344 = vadd.f32 %v3259, %v3343
        %v3345 = vpop.f32.mrf.mxu0
        %v3346 = vpop.f32.mrf.mxu0
        %v3347 = vadd.f32 %v3259, %v3346
        %v3348 = vpop.f32.mrf.mxu0
        %3349 = vdwg.mxu0
        %v3350 = vpack.c.bf16 %v3347, %v3344
        %v3352 = vunpack.c.l.b16 %v3350
        %v3353 = vunpack.c.h.b16 %v3350
        %v3354 = vpack.c.b16 %v3352, %v3352
        %v3355 = vpack.c.b16 %v3353, %v3353
        %3358 = vst [vmem:[%s490] sm:$0xf] %v3354
        %3359 = vst [vmem:[%s490 + $0x4] sm:$0xf] %v3355
        %s3360 = sand.u32 %s275, 1
        %s3361 = scalar_lea.sflag [#allocation4], %s3360
        %s3362 = sand.u32 %s275, 1
        %s3363 = smul.addr %s3362, 8
        %s3364 = scalar_lea.vmem [#allocation14], %s3363
        // Predicated region
        $region93: #{tpu_custom_call.1} parent=63 // pred_check
          %p3365 = pneg %p285
        $region94: #{tpu_custom_call.1} parent=63 // pred_check_branch
          %3367 = sbr.rel (%p3365) target = $region96
        $region95: #{tpu_custom_call.1} parent=63 // pred_region
          %s3368 = smul.u32 2, %s31
          %s3370 = ssub.s32 128, 128
          %3371 = vsyncadd %s3361, %s3370
          %s3372 = smul.addr %s3368, 64
          %s3373 = scalar_lea.hbm %s11, %s3372
          %s3374 = sshll.u32 %s3364, 4
          %s3375 = int_to_ptr.vmem [resolvable:$true] %s3374
          %3380 = dma.vmem_to_hbm [thread:$0]  %s3375, 128, %s3373, %s3361, 64, 64, 4
        $region96: #{tpu_custom_call.1} parent=63 // pred_fallthru
          _
      $region64: #{tpu_custom_call.1} parent=5 // pred_fallthru
        _
      %p3381 = scmp.le.s32.totalorder 2, %s26
      // Predicated region
      $region97: #{tpu_custom_call.1} parent=5 // pred_check
        %p3382 = pneg %p3381
      $region98: #{tpu_custom_call.1} parent=5 // pred_check_branch
        %3384 = sbr.rel (%p3382) target = $region100
      $region99: #{tpu_custom_call.1} parent=5 // pred_region
        %s3385 = ssub.s32 %s26, 2
        // Predicated region
        $region101: #{tpu_custom_call.1} parent=99 // pred_check
          %p3386 = pneg %p291
        $region102: #{tpu_custom_call.1} parent=99 // pred_check_branch
          %3388 = sbr.rel (%p3386) target = $region104
        $region103: #{tpu_custom_call.1} parent=99 // pred_region
          %s3389 = sand.u32 %s276, 1
          %s3390 = scalar_lea.sflag [#allocation4], %s3389
          %s3391 = sand.u32 %s276, 1
          %s3392 = smul.addr %s3391, 8
          %s3393 = scalar_lea.vmem [#allocation14], %s3392
          %3394 = dma.done %s3390, 128
        $region104: #{tpu_custom_call.1} parent=99 // pred_fallthru
          _
      $region100: #{tpu_custom_call.1} parent=5 // pred_fallthru
        _
    $region6: #{tpu_custom_call.1} parent=1 // loop_footer
      %s30 = sadd.s32 1, %s26
    $region7: #{tpu_custom_call.1} parent=1 // loop_footer_branch
      %25 = sbr.rel target = $region3
    $region8: #{tpu_custom_call.1} parent=1 // loop_exit
      _
    %3395 = vsyncpa [#allocation3], 1
    %s3396 = scalar_lea.sflag [#allocation3], 1
    %3397 = vsyncpa %s3396, 1
    %3398 = vsyncpa [#allocation6], 1
    %3399 = vsyncpa [#allocation9], 1
    %3400 = vsyncpa [#allocation12], 1
    %3401 = vsyncpa [#allocation4], 1
    %s3402 = scalar_lea.sflag [#allocation4], 1
    %3403 = vsyncpa %s3402, 1

</llo_original>
